<compile_context>
chip_gen: v5e
topology: v5e:2x2
jax: 0.10.0
libtpu: 0.0.40
codegen_flags: <defaults>
</compile_context>

<pallas_src>
import functools

import jax
import jax.numpy as jnp
from jax import lax
from jax.experimental import pallas as pl
from jax.experimental.pallas import tpu as pltpu

EPS = 1e-5


# ------------------------------ Pallas kernel ------------------------------ #
def _resblock_kernel(a_ref, w1_ref, b1_ref, w2_ref, wres_ref, b2r_ref,
                     o_ref, hp_ref, *, k1, Ho, Wo, res_off):
    """Fused resblock for one image.

    a_ref  : (Ha, Wa, Ca)  f32   input slab (padded NHWC or space-to-depth planes)
    w1_ref : (k1*k1, Ca, hid) bf16  conv1 weights (BN1 scale folded in)
    b1_ref : (1, hid) f32           folded BN1 bias
    w2_ref : (9, hid, Cpad) bf16    conv2 weights (BN2 scale folded, Cout padded)
    wres_ref: (Ca, Cpad) bf16       residual matrix (identity or folded 1x1 conv)
    b2r_ref: (1, Cpad) f32          folded BN2 bias + residual bias
    o_ref  : (Ho, Wo, Cpad) f32     output block
    hp_ref : (Ho+2, Wo+2, hid) f32  VMEM scratch: zero-padded hidden activation
    """
    Ca = a_ref.shape[-1]
    hid = hp_ref.shape[-1]
    Cpad = o_ref.shape[-1]
    M = Ho * Wo

    # ---- conv1 (+ folded BN1) + ReLU: k1*k1 shifted-window matmuls ----
    acc1 = jnp.zeros((M, hid), jnp.float32)
    for dy in range(k1):
        for dx in range(k1):
            t = dy * k1 + dx
            patch = a_ref[dy:dy + Ho, dx:dx + Wo, :].reshape(M, Ca)
            acc1 = acc1 + jnp.dot(patch.astype(jnp.bfloat16), w1_ref[t],
                                  preferred_element_type=jnp.float32)
    h = jnp.maximum(acc1 + b1_ref[...], 0.0)

    # ---- zero-padded h held in VMEM (never written to HBM) ----
    hp_ref[...] = jnp.zeros_like(hp_ref)
    hp_ref[1:Ho + 1, 1:Wo + 1, :] = h.reshape(Ho, Wo, hid)

    # ---- conv2 (+ folded BN2): 9 shifted-window matmuls over padded h ----
    acc2 = jnp.zeros((M, Cpad), jnp.float32)
    for dy in range(3):
        for dx in range(3):
            t = dy * 3 + dx
            patch = hp_ref[dy:dy + Ho, dx:dx + Wo, :].reshape(M, hid)
            acc2 = acc2 + jnp.dot(patch.astype(jnp.bfloat16), w2_ref[t],
                                  preferred_element_type=jnp.float32)

    # ---- fused residual branch (identity or 1x1-stride-2 conv + BN) ----
    r0, r1 = res_off
    rpatch = a_ref[r0:r0 + Ho, r1:r1 + Wo, :].reshape(M, Ca)
    acc2 = acc2 + jnp.dot(rpatch.astype(jnp.bfloat16), wres_ref[...],
                          preferred_element_type=jnp.float32)

    out = jnp.maximum(acc2 + b2r_ref[...], 0.0)
    o_ref[...] = out.reshape(Ho, Wo, Cpad)


# ------------------------------- JAX wrapper -------------------------------- #
def _fold_bn(conv_b, gamma, beta, mean, var):
    scale = gamma * lax.rsqrt(var + EPS)
    bias = beta + scale * (conv_b - mean)
    return scale, bias


def _round_up(x, m):
    return ((x + m - 1) // m) * m


def resblock_forward(x_nchw, params, ps):
    x = jnp.transpose(x_nchw, (0, 2, 3, 1)).astype(jnp.float32)  # NHWC
    N, H, W, Cin = x.shape
    hid = params["conv2_w"].shape[1]
    Cout = params["conv2_w"].shape[0]
    Cpad = _round_up(Cout, 128)  # lane-dense output / compute channels

    # conv2 + BN2 folding (shared by both branches)
    s2, b2 = _fold_bn(params["conv2_b"], *params["bn2"])
    w2 = jnp.transpose(params["conv2_w"] * s2[:, None, None, None],
                       (2, 3, 1, 0)).reshape(9, hid, Cout)          # (ky,kx,hid,Cout)
    w2 = jnp.pad(w2, ((0, 0), (0, 0), (0, Cpad - Cout)))

    if ps:
        assert H % 2 == 0 and W % 2 == 0, "ps path assumes even spatial dims"
        Ho, Wo = H // 2, W // 2
        # space-to-depth of the zero-padded input: stride-2 3x3 conv becomes a
        # stride-1 2x2 conv over 4*Cin parity-plane channels (q = 2*a + b).
        xp = jnp.pad(x, ((0, 0), (1, 1), (1, 1), (0, 0)))
        planes = [xp[:, a::2, b::2, :] for a in (0, 1) for b in (0, 1)]
        a_slab = jnp.concatenate(planes, axis=-1)                   # (N, Ho+1, Wo+1, 4*Cin)
        Ca, k1 = 4 * Cin, 2

        s1, b1 = _fold_bn(params["conv1_ps_b"], *params["bn1"])
        wk = jnp.transpose(params["conv1_ps_w"] * s1[:, None, None, None],
                           (2, 3, 1, 0))                            # (3,3,Cin,hid)
        wk = jnp.pad(wk, ((0, 1), (0, 1), (0, 0), (0, 0)))          # taps dy/dx==3 are zero
        wk = wk.reshape(2, 2, 2, 2, Cin, hid)                       # (oy,a,ox,b,Cin,hid)
        w1 = jnp.transpose(wk, (0, 2, 1, 3, 4, 5)).reshape(4, Ca, hid)

        # residual = BN_ps(conv_ps(x)); x[2i,2j] is the odd-odd parity plane
        # (channel block q=3) of the slab at spatial offset (0, 0).
        sps, bres = _fold_bn(params["conv_ps_b"], *params["bn_ps"])
        wps = (params["conv_ps_w"][:, :, 0, 0] * sps[:, None]).T    # (Cin, Cout)
        wres = jnp.zeros((Ca, Cpad), jnp.float32).at[3 * Cin:, :Cout].set(wps)
        res_off = (0, 0)
    else:
        assert Cin == Cout, "identity residual requires in_ch == out_ch"
        Ho, Wo = H, W
        a_slab = jnp.pad(x, ((0, 0), (1, 1), (1, 1), (0, 0)))       # (N, H+2, W+2, Cin)
        Ca, k1 = Cin, 3

        s1, b1 = _fold_bn(params["conv1_b"], *params["bn1"])
        w1 = jnp.transpose(params["conv1_w"] * s1[:, None, None, None],
                           (2, 3, 1, 0)).reshape(9, Cin, hid)

        wres = jnp.eye(Cin, Cpad, dtype=jnp.float32)                # identity residual
        bres = jnp.zeros((Cout,), jnp.float32)
        res_off = (1, 1)                                            # center of the padded slab

    b1v = b1.reshape(1, hid).astype(jnp.float32)
    b2r = jnp.pad(b2 + bres, (0, Cpad - Cout)).reshape(1, Cpad).astype(jnp.float32)

    # bf16 weights feed the MXU at native throughput (accumulation stays f32).
    w1 = w1.astype(jnp.bfloat16)
    w2 = w2.astype(jnp.bfloat16)
    wres = wres.astype(jnp.bfloat16)

    Ha, Wa = a_slab.shape[1], a_slab.shape[2]
    kernel = functools.partial(_resblock_kernel, k1=k1, Ho=Ho, Wo=Wo, res_off=res_off)

    out = pl.pallas_call(
        kernel,
        out_shape=jax.ShapeDtypeStruct((N, Ho, Wo, Cpad), jnp.float32),
        grid=(N,),
        in_specs=[
            pl.BlockSpec((None, Ha, Wa, Ca), lambda n: (n, 0, 0, 0)),
            pl.BlockSpec((k1 * k1, Ca, hid), lambda n: (0, 0, 0)),
            pl.BlockSpec((1, hid), lambda n: (0, 0)),
            pl.BlockSpec((9, hid, Cpad), lambda n: (0, 0, 0)),
            pl.BlockSpec((Ca, Cpad), lambda n: (0, 0)),
            pl.BlockSpec((1, Cpad), lambda n: (0, 0)),
        ],
        out_specs=pl.BlockSpec((None, Ho, Wo, Cpad), lambda n: (n, 0, 0, 0)),
        scratch_shapes=[pltpu.VMEM((Ho + 2, Wo + 2, hid), jnp.float32)],
        compiler_params=pltpu.CompilerParams(
            dimension_semantics=("parallel",),
            vmem_limit_bytes=64 * 1024 * 1024,
        ),
    )(a_slab, w1, b1v, w2, wres, b2r)

    y = out[..., :Cout]                                   # drop lane padding
    return jnp.transpose(y, (0, 3, 1, 2))                 # back to NCHW


# ------------------------- reference (pure JAX/XLA) ------------------------- #
def _ref_conv(x, w, b, stride, pad):
    y = lax.conv_general_dilated(
        x, w, (stride, stride), ((pad, pad), (pad, pad)),
        dimension_numbers=("NCHW", "OIHW", "NCHW"),
        precision=lax.Precision.HIGHEST)
    return y + b[None, :, None, None]


def _ref_bn(y, gamma, beta, mean, var):
    inv = gamma / jnp.sqrt(var + EPS)
    return (y - mean[None, :, None, None]) * inv[None, :, None, None] \
        + beta[None, :, None, None]


def resblock_reference(x, params, ps):
    if ps:
        a = _ref_conv(x, params["conv1_ps_w"], params["conv1_ps_b"], 2, 1)
    else:
        a = _ref_conv(x, params["conv1_w"], params["conv1_b"], 1, 1)
    a = jnp.maximum(_ref_bn(a, *params["bn1"]), 0.0)
    a = _ref_bn(_ref_conv(a, params["conv2_w"], params["conv2_b"], 1, 1),
                *params["bn2"])
    if ps:
        x = _ref_conv(x, params["conv_ps_w"], params["conv_ps_b"], 2, 0)
        x = _ref_bn(x, *params["bn_ps"])
    return jnp.maximum(x + a, 0.0)


# ------------------------------ param init --------------------------------- #
def init_params(key, in_ch, hid_ch, out_ch):
    ks = jax.random.split(key, 11)
    n = lambda k, shape, s=0.1: (s * jax.random.normal(k, shape)).astype(jnp.float32)

    def bn_params(k, ch):
        k1, k2, k3, k4 = jax.random.split(k, 4)
        gamma = 1.0 + 0.1 * jax.random.normal(k1, (ch,))
        beta = 0.1 * jax.random.normal(k2, (ch,))
        mean = 0.1 * jax.random.normal(k3, (ch,))
        var = jax.random.uniform(k4, (ch,), minval=0.5, maxval=1.5)
        return (gamma.astype(jnp.float32), beta.astype(jnp.float32),
                mean.astype(jnp.float32), var.astype(jnp.float32))

    return {
        "conv1_ps_w": n(ks[0], (hid_ch, in_ch, 3, 3)),
        "conv1_ps_b": n(ks[1], (hid_ch,)),
        "conv1_w": n(ks[2], (hid_ch, in_ch, 3, 3)),
        "conv1_b": n(ks[3], (hid_ch,)),
        "conv2_w": n(ks[4], (out_ch, hid_ch, 3, 3)),
        "conv2_b": n(ks[5], (out_ch,)),
        "conv_ps_w": n(ks[6], (out_ch, in_ch, 1, 1)),
        "conv_ps_b": n(ks[7], (out_ch,)),
        "bn1": bn_params(ks[8], hid_ch),
        "bn2": bn_params(ks[9], out_ch),
        "bn_ps": bn_params(ks[10], out_ch),
    }


if __name__ == "__main__":
    key = jax.random.PRNGKey(0)
    kx, kp1, kp2 = jax.random.split(key, 3)
    fwd = jax.jit(resblock_forward, static_argnames=("ps",))

    # bf16 MXU inputs vs. the f32 HIGHEST-precision reference -> 2e-2 tolerance.
    RTOL = ATOL = 2e-2

    # Case 1: ps=True (downsampling residual block), x: (2, 4, 16, 16)
    in_ch, hid_ch, out_ch = 4, 8, 8
    x = jax.random.normal(kx, (2, in_ch, 16, 16), dtype=jnp.float32)
    params = init_params(kp1, in_ch, hid_ch, out_ch)
    y = jax.block_until_ready(fwd(x, params, ps=True))
    y_ref = resblock_reference(x, params, ps=True)
    assert y.shape == (2, out_ch, 8, 8)
    assert jnp.allclose(y, y_ref, rtol=RTOL, atol=ATOL), \
        f"ps=True mismatch, max err {jnp.max(jnp.abs(y - y_ref))}"

    # Case 2: ps=False (identity residual, requires in_ch == out_ch)
    in_ch2, hid_ch2, out_ch2 = 4, 8, 4
    params2 = init_params(kp2, in_ch2, hid_ch2, out_ch2)
    x2 = jax.random.normal(kx, (2, in_ch2, 16, 16), dtype=jnp.float32)
    y2 = jax.block_until_ready(fwd(x2, params2, ps=False))
    y2_ref = resblock_reference(x2, params2, ps=False)
    assert y2.shape == (2, out_ch2, 16, 16)
    assert jnp.allclose(y2, y2_ref, rtol=RTOL, atol=ATOL), \
        f"ps=False mismatch, max err {jnp.max(jnp.abs(y2 - y2_ref))}"

    print("KERNEL_OK")
</pallas_src>

<mosaic_0001>
module attributes {stable_mosaic.version = 11 : i64} {
  func.func @_resblock_kernel(%arg0: i32, %arg1: memref<1x9x9x16xf32, #tpu.memory_space<vmem>>, %arg2: memref<4x16x8xbf16, #tpu.memory_space<vmem>>, %arg3: memref<1x8xf32, #tpu.memory_space<vmem>>, %arg4: memref<9x8x128xbf16, #tpu.memory_space<vmem>>, %arg5: memref<16x128xbf16, #tpu.memory_space<vmem>>, %arg6: memref<1x128xf32, #tpu.memory_space<vmem>>, %arg7: memref<1x8x8x128xf32, #tpu.memory_space<vmem>>, %arg8: memref<10x10x8xf32, #tpu.memory_space<vmem>>) attributes {dimension_semantics = [#tpu.dimension_semantics<parallel>], iteration_bounds = array<i64: 2>, scalar_prefetch = 0 : i64, scratch_operands = 1 : i64, tpu.core_type = #tpu.core_type<tc>, window_params = [{transform_indices = @transform_0, window_bounds = array<i64: 1, 9, 9, 16>}, {pipeline_mode = #tpu.pipeline_mode<synchronous>, transform_indices = @transform_1, window_bounds = array<i64: 4, 16, 8>}, {pipeline_mode = #tpu.pipeline_mode<synchronous>, transform_indices = @transform_2, window_bounds = array<i64: 1, 8>}, {pipeline_mode = #tpu.pipeline_mode<synchronous>, transform_indices = @transform_3, window_bounds = array<i64: 9, 8, 128>}, {pipeline_mode = #tpu.pipeline_mode<synchronous>, transform_indices = @transform_4, window_bounds = array<i64: 16, 128>}, {pipeline_mode = #tpu.pipeline_mode<synchronous>, transform_indices = @transform_5, window_bounds = array<i64: 1, 128>}, {transform_indices = @transform_6, window_bounds = array<i64: 1, 8, 8, 128>}]} {
    %cst = arith.constant 0.000000e+00 : f32
    %0 = vector.broadcast %cst : f32 to vector<64x8xf32>
    %c0 = arith.constant 0 : index
    %c0_0 = arith.constant 0 : index
    %c0_1 = arith.constant 0 : index
    %c0_2 = arith.constant 0 : index
    %1 = vector.load %arg1[%c0, %c0_0, %c0_1, %c0_2] : memref<1x9x9x16xf32, #tpu.memory_space<vmem>>, vector<1x8x8x16xf32>
    %2 = vector.shape_cast %1 : vector<1x8x8x16xf32> to vector<8x8x16xf32>
    %3 = vector.shape_cast %2 : vector<8x8x16xf32> to vector<64x16xf32>
    %4 = arith.truncf %3 : vector<64x16xf32> to vector<64x16xbf16>
    %c0_3 = arith.constant 0 : index
    %c0_4 = arith.constant 0 : index
    %c0_5 = arith.constant 0 : index
    %5 = vector.load %arg2[%c0_3, %c0_4, %c0_5] : memref<4x16x8xbf16, #tpu.memory_space<vmem>>, vector<1x16x8xbf16>
    %6 = vector.shape_cast %5 : vector<1x16x8xbf16> to vector<16x8xbf16>
    %cst_6 = arith.constant dense<0.000000e+00> : vector<64x8xf32>
    %7 = tpu.matmul %4, %6, %cst_6 {dimension_numbers = #tpu.dot_dimension_numbers<[1], [0], [0], [1], [0, 0, 1, 1], [], []>} : vector<64x16xbf16>, vector<16x8xbf16>, vector<64x8xf32> -> vector<64x8xf32>
    %8 = arith.addf %0, %7 : vector<64x8xf32>
    %c0_7 = arith.constant 0 : index
    %c0_8 = arith.constant 0 : index
    %c1 = arith.constant 1 : index
    %c0_9 = arith.constant 0 : index
    %9 = vector.load %arg1[%c0_7, %c0_8, %c1, %c0_9] : memref<1x9x9x16xf32, #tpu.memory_space<vmem>>, vector<1x8x8x16xf32>
    %10 = vector.shape_cast %9 : vector<1x8x8x16xf32> to vector<8x8x16xf32>
    %11 = vector.shape_cast %10 : vector<8x8x16xf32> to vector<64x16xf32>
    %12 = arith.truncf %11 : vector<64x16xf32> to vector<64x16xbf16>
    %c1_10 = arith.constant 1 : index
    %c0_11 = arith.constant 0 : index
    %c0_12 = arith.constant 0 : index
    %13 = vector.load %arg2[%c1_10, %c0_11, %c0_12] : memref<4x16x8xbf16, #tpu.memory_space<vmem>>, vector<1x16x8xbf16>
    %14 = vector.shape_cast %13 : vector<1x16x8xbf16> to vector<16x8xbf16>
    %cst_13 = arith.constant dense<0.000000e+00> : vector<64x8xf32>
    %15 = tpu.matmul %12, %14, %cst_13 {dimension_numbers = #tpu.dot_dimension_numbers<[1], [0], [0], [1], [0, 0, 1, 1], [], []>} : vector<64x16xbf16>, vector<16x8xbf16>, vector<64x8xf32> -> vector<64x8xf32>
    %16 = arith.addf %8, %15 : vector<64x8xf32>
    %c0_14 = arith.constant 0 : index
    %c1_15 = arith.constant 1 : index
    %c0_16 = arith.constant 0 : index
    %c0_17 = arith.constant 0 : index
    %17 = vector.load %arg1[%c0_14, %c1_15, %c0_16, %c0_17] : memref<1x9x9x16xf32, #tpu.memory_space<vmem>>, vector<1x8x8x16xf32>
    %18 = vector.shape_cast %17 : vector<1x8x8x16xf32> to vector<8x8x16xf32>
    %19 = vector.shape_cast %18 : vector<8x8x16xf32> to vector<64x16xf32>
    %20 = arith.truncf %19 : vector<64x16xf32> to vector<64x16xbf16>
    %c2 = arith.constant 2 : index
    %c0_18 = arith.constant 0 : index
    %c0_19 = arith.constant 0 : index
    %21 = vector.load %arg2[%c2, %c0_18, %c0_19] : memref<4x16x8xbf16, #tpu.memory_space<vmem>>, vector<1x16x8xbf16>
    %22 = vector.shape_cast %21 : vector<1x16x8xbf16> to vector<16x8xbf16>
    %cst_20 = arith.constant dense<0.000000e+00> : vector<64x8xf32>
    %23 = tpu.matmul %20, %22, %cst_20 {dimension_numbers = #tpu.dot_dimension_numbers<[1], [0], [0], [1], [0, 0, 1, 1], [], []>} : vector<64x16xbf16>, vector<16x8xbf16>, vector<64x8xf32> -> vector<64x8xf32>
    %24 = arith.addf %16, %23 : vector<64x8xf32>
    %c0_21 = arith.constant 0 : index
    %c1_22 = arith.constant 1 : index
    %c1_23 = arith.constant 1 : index
    %c0_24 = arith.constant 0 : index
    %25 = vector.load %arg1[%c0_21, %c1_22, %c1_23, %c0_24] : memref<1x9x9x16xf32, #tpu.memory_space<vmem>>, vector<1x8x8x16xf32>
    %26 = vector.shape_cast %25 : vector<1x8x8x16xf32> to vector<8x8x16xf32>
    %27 = vector.shape_cast %26 : vector<8x8x16xf32> to vector<64x16xf32>
    %28 = arith.truncf %27 : vector<64x16xf32> to vector<64x16xbf16>
    %c3 = arith.constant 3 : index
    %c0_25 = arith.constant 0 : index
    %c0_26 = arith.constant 0 : index
    %29 = vector.load %arg2[%c3, %c0_25, %c0_26] : memref<4x16x8xbf16, #tpu.memory_space<vmem>>, vector<1x16x8xbf16>
    %30 = vector.shape_cast %29 : vector<1x16x8xbf16> to vector<16x8xbf16>
    %cst_27 = arith.constant dense<0.000000e+00> : vector<64x8xf32>
    %31 = tpu.matmul %28, %30, %cst_27 {dimension_numbers = #tpu.dot_dimension_numbers<[1], [0], [0], [1], [0, 0, 1, 1], [], []>} : vector<64x16xbf16>, vector<16x8xbf16>, vector<64x8xf32> -> vector<64x8xf32>
    %32 = arith.addf %24, %31 : vector<64x8xf32>
    %c0_28 = arith.constant 0 : index
    %c0_29 = arith.constant 0 : index
    %33 = vector.load %arg3[%c0_28, %c0_29] : memref<1x8xf32, #tpu.memory_space<vmem>>, vector<1x8xf32>
    %34 = vector.broadcast %33 : vector<1x8xf32> to vector<64x8xf32>
    %35 = arith.addf %32, %34 : vector<64x8xf32>
    %cst_30 = arith.constant 0.000000e+00 : f32
    %36 = vector.broadcast %cst_30 : f32 to vector<64x8xf32>
    %37 = arith.maximumf %35, %36 : vector<64x8xf32>
    %cst_31 = arith.constant 0.000000e+00 : f32
    %38 = vector.broadcast %cst_31 : f32 to vector<10x10x8xf32>
    %c0_32 = arith.constant 0 : index
    %c0_33 = arith.constant 0 : index
    %c0_34 = arith.constant 0 : index
    %39 = vector.load %arg8[%c0_32, %c0_33, %c0_34] : memref<10x10x8xf32, #tpu.memory_space<vmem>>, vector<10x10x8xf32>
    tpu.vector_store %arg8[%c0_32, %c0_33, %c0_34], %38 {strides = array<i32>} : memref<10x10x8xf32, #tpu.memory_space<vmem>>, vector<10x10x8xf32>,
    %40 = vector.shape_cast %37 : vector<64x8xf32> to vector<8x8x8xf32>
    %c1_35 = arith.constant 1 : index
    %c1_36 = arith.constant 1 : index
    %c0_37 = arith.constant 0 : index
    %41 = vector.load %arg8[%c1_35, %c1_36, %c0_37] : memref<10x10x8xf32, #tpu.memory_space<vmem>>, vector<8x8x8xf32>
    tpu.vector_store %arg8[%c1_35, %c1_36, %c0_37], %40 {strides = array<i32>} : memref<10x10x8xf32, #tpu.memory_space<vmem>>, vector<8x8x8xf32>,
    %cst_38 = arith.constant 0.000000e+00 : f32
    %42 = vector.broadcast %cst_38 : f32 to vector<64x128xf32>
    %c0_39 = arith.constant 0 : index
    %c0_40 = arith.constant 0 : index
    %c0_41 = arith.constant 0 : index
    %43 = vector.load %arg8[%c0_39, %c0_40, %c0_41] : memref<10x10x8xf32, #tpu.memory_space<vmem>>, vector<8x8x8xf32>
    %44 = vector.shape_cast %43 : vector<8x8x8xf32> to vector<64x8xf32>
    %45 = arith.truncf %44 : vector<64x8xf32> to vector<64x8xbf16>
    %c0_42 = arith.constant 0 : index
    %c0_43 = arith.constant 0 : index
    %c0_44 = arith.constant 0 : index
    %46 = vector.load %arg4[%c0_42, %c0_43, %c0_44] : memref<9x8x128xbf16, #tpu.memory_space<vmem>>, vector<1x8x128xbf16>
    %47 = vector.shape_cast %46 : vector<1x8x128xbf16> to vector<8x128xbf16>
    %cst_45 = arith.constant dense<0.000000e+00> : vector<64x128xf32>
    %48 = tpu.matmul %45, %47, %cst_45 {dimension_numbers = #tpu.dot_dimension_numbers<[1], [0], [0], [1], [0, 0, 1, 1], [], []>} : vector<64x8xbf16>, vector<8x128xbf16>, vector<64x128xf32> -> vector<64x128xf32>
    %49 = arith.addf %42, %48 : vector<64x128xf32>
    %c0_46 = arith.constant 0 : index
    %c1_47 = arith.constant 1 : index
    %c0_48 = arith.constant 0 : index
    %50 = vector.load %arg8[%c0_46, %c1_47, %c0_48] : memref<10x10x8xf32, #tpu.memory_space<vmem>>, vector<8x8x8xf32>
    %51 = vector.shape_cast %50 : vector<8x8x8xf32> to vector<64x8xf32>
    %52 = arith.truncf %51 : vector<64x8xf32> to vector<64x8xbf16>
    %c1_49 = arith.constant 1 : index
    %c0_50 = arith.constant 0 : index
    %c0_51 = arith.constant 0 : index
    %53 = vector.load %arg4[%c1_49, %c0_50, %c0_51] : memref<9x8x128xbf16, #tpu.memory_space<vmem>>, vector<1x8x128xbf16>
    %54 = vector.shape_cast %53 : vector<1x8x128xbf16> to vector<8x128xbf16>
    %cst_52 = arith.constant dense<0.000000e+00> : vector<64x128xf32>
    %55 = tpu.matmul %52, %54, %cst_52 {dimension_numbers = #tpu.dot_dimension_numbers<[1], [0], [0], [1], [0, 0, 1, 1], [], []>} : vector<64x8xbf16>, vector<8x128xbf16>, vector<64x128xf32> -> vector<64x128xf32>
    %56 = arith.addf %49, %55 : vector<64x128xf32>
    %c0_53 = arith.constant 0 : index
    %c2_54 = arith.constant 2 : index
    %c0_55 = arith.constant 0 : index
    %57 = vector.load %arg8[%c0_53, %c2_54, %c0_55] : memref<10x10x8xf32, #tpu.memory_space<vmem>>, vector<8x8x8xf32>
    %58 = vector.shape_cast %57 : vector<8x8x8xf32> to vector<64x8xf32>
    %59 = arith.truncf %58 : vector<64x8xf32> to vector<64x8xbf16>
    %c2_56 = arith.constant 2 : index
    %c0_57 = arith.constant 0 : index
    %c0_58 = arith.constant 0 : index
    %60 = vector.load %arg4[%c2_56, %c0_57, %c0_58] : memref<9x8x128xbf16, #tpu.memory_space<vmem>>, vector<1x8x128xbf16>
    %61 = vector.shape_cast %60 : vector<1x8x128xbf16> to vector<8x128xbf16>
    %cst_59 = arith.constant dense<0.000000e+00> : vector<64x128xf32>
    %62 = tpu.matmul %59, %61, %cst_59 {dimension_numbers = #tpu.dot_dimension_numbers<[1], [0], [0], [1], [0, 0, 1, 1], [], []>} : vector<64x8xbf16>, vector<8x128xbf16>, vector<64x128xf32> -> vector<64x128xf32>
    %63 = arith.addf %56, %62 : vector<64x128xf32>
    %c1_60 = arith.constant 1 : index
    %c0_61 = arith.constant 0 : index
    %c0_62 = arith.constant 0 : index
    %64 = vector.load %arg8[%c1_60, %c0_61, %c0_62] : memref<10x10x8xf32, #tpu.memory_space<vmem>>, vector<8x8x8xf32>
    %65 = vector.shape_cast %64 : vector<8x8x8xf32> to vector<64x8xf32>
    %66 = arith.truncf %65 : vector<64x8xf32> to vector<64x8xbf16>
    %c3_63 = arith.constant 3 : index
    %c0_64 = arith.constant 0 : index
    %c0_65 = arith.constant 0 : index
    %67 = vector.load %arg4[%c3_63, %c0_64, %c0_65] : memref<9x8x128xbf16, #tpu.memory_space<vmem>>, vector<1x8x128xbf16>
    %68 = vector.shape_cast %67 : vector<1x8x128xbf16> to vector<8x128xbf16>
    %cst_66 = arith.constant dense<0.000000e+00> : vector<64x128xf32>
    %69 = tpu.matmul %66, %68, %cst_66 {dimension_numbers = #tpu.dot_dimension_numbers<[1], [0], [0], [1], [0, 0, 1, 1], [], []>} : vector<64x8xbf16>, vector<8x128xbf16>, vector<64x128xf32> -> vector<64x128xf32>
    %70 = arith.addf %63, %69 : vector<64x128xf32>
    %c1_67 = arith.constant 1 : index
    %c1_68 = arith.constant 1 : index
    %c0_69 = arith.constant 0 : index
    %71 = vector.load %arg8[%c1_67, %c1_68, %c0_69] : memref<10x10x8xf32, #tpu.memory_space<vmem>>, vector<8x8x8xf32>
    %72 = vector.shape_cast %71 : vector<8x8x8xf32> to vector<64x8xf32>
    %73 = arith.truncf %72 : vector<64x8xf32> to vector<64x8xbf16>
    %c4 = arith.constant 4 : index
    %c0_70 = arith.constant 0 : index
    %c0_71 = arith.constant 0 : index
    %74 = vector.load %arg4[%c4, %c0_70, %c0_71] : memref<9x8x128xbf16, #tpu.memory_space<vmem>>, vector<1x8x128xbf16>
    %75 = vector.shape_cast %74 : vector<1x8x128xbf16> to vector<8x128xbf16>
    %cst_72 = arith.constant dense<0.000000e+00> : vector<64x128xf32>
    %76 = tpu.matmul %73, %75, %cst_72 {dimension_numbers = #tpu.dot_dimension_numbers<[1], [0], [0], [1], [0, 0, 1, 1], [], []>} : vector<64x8xbf16>, vector<8x128xbf16>, vector<64x128xf32> -> vector<64x128xf32>
    %77 = arith.addf %70, %76 : vector<64x128xf32>
    %c1_73 = arith.constant 1 : index
    %c2_74 = arith.constant 2 : index
    %c0_75 = arith.constant 0 : index
    %78 = vector.load %arg8[%c1_73, %c2_74, %c0_75] : memref<10x10x8xf32, #tpu.memory_space<vmem>>, vector<8x8x8xf32>
    %79 = vector.shape_cast %78 : vector<8x8x8xf32> to vector<64x8xf32>
    %80 = arith.truncf %79 : vector<64x8xf32> to vector<64x8xbf16>
    %c5 = arith.constant 5 : index
    %c0_76 = arith.constant 0 : index
    %c0_77 = arith.constant 0 : index
    %81 = vector.load %arg4[%c5, %c0_76, %c0_77] : memref<9x8x128xbf16, #tpu.memory_space<vmem>>, vector<1x8x128xbf16>
    %82 = vector.shape_cast %81 : vector<1x8x128xbf16> to vector<8x128xbf16>
    %cst_78 = arith.constant dense<0.000000e+00> : vector<64x128xf32>
    %83 = tpu.matmul %80, %82, %cst_78 {dimension_numbers = #tpu.dot_dimension_numbers<[1], [0], [0], [1], [0, 0, 1, 1], [], []>} : vector<64x8xbf16>, vector<8x128xbf16>, vector<64x128xf32> -> vector<64x128xf32>
    %84 = arith.addf %77, %83 : vector<64x128xf32>
    %c2_79 = arith.constant 2 : index
    %c0_80 = arith.constant 0 : index
    %c0_81 = arith.constant 0 : index
    %85 = vector.load %arg8[%c2_79, %c0_80, %c0_81] : memref<10x10x8xf32, #tpu.memory_space<vmem>>, vector<8x8x8xf32>
    %86 = vector.shape_cast %85 : vector<8x8x8xf32> to vector<64x8xf32>
    %87 = arith.truncf %86 : vector<64x8xf32> to vector<64x8xbf16>
    %c6 = arith.constant 6 : index
    %c0_82 = arith.constant 0 : index
    %c0_83 = arith.constant 0 : index
    %88 = vector.load %arg4[%c6, %c0_82, %c0_83] : memref<9x8x128xbf16, #tpu.memory_space<vmem>>, vector<1x8x128xbf16>
    %89 = vector.shape_cast %88 : vector<1x8x128xbf16> to vector<8x128xbf16>
    %cst_84 = arith.constant dense<0.000000e+00> : vector<64x128xf32>
    %90 = tpu.matmul %87, %89, %cst_84 {dimension_numbers = #tpu.dot_dimension_numbers<[1], [0], [0], [1], [0, 0, 1, 1], [], []>} : vector<64x8xbf16>, vector<8x128xbf16>, vector<64x128xf32> -> vector<64x128xf32>
    %91 = arith.addf %84, %90 : vector<64x128xf32>
    %c2_85 = arith.constant 2 : index
    %c1_86 = arith.constant 1 : index
    %c0_87 = arith.constant 0 : index
    %92 = vector.load %arg8[%c2_85, %c1_86, %c0_87] : memref<10x10x8xf32, #tpu.memory_space<vmem>>, vector<8x8x8xf32>
    %93 = vector.shape_cast %92 : vector<8x8x8xf32> to vector<64x8xf32>
    %94 = arith.truncf %93 : vector<64x8xf32> to vector<64x8xbf16>
    %c7 = arith.constant 7 : index
    %c0_88 = arith.constant 0 : index
    %c0_89 = arith.constant 0 : index
    %95 = vector.load %arg4[%c7, %c0_88, %c0_89] : memref<9x8x128xbf16, #tpu.memory_space<vmem>>, vector<1x8x128xbf16>
    %96 = vector.shape_cast %95 : vector<1x8x128xbf16> to vector<8x128xbf16>
    %cst_90 = arith.constant dense<0.000000e+00> : vector<64x128xf32>
    %97 = tpu.matmul %94, %96, %cst_90 {dimension_numbers = #tpu.dot_dimension_numbers<[1], [0], [0], [1], [0, 0, 1, 1], [], []>} : vector<64x8xbf16>, vector<8x128xbf16>, vector<64x128xf32> -> vector<64x128xf32>
    %98 = arith.addf %91, %97 : vector<64x128xf32>
    %c2_91 = arith.constant 2 : index
    %c2_92 = arith.constant 2 : index
    %c0_93 = arith.constant 0 : index
    %99 = vector.load %arg8[%c2_91, %c2_92, %c0_93] : memref<10x10x8xf32, #tpu.memory_space<vmem>>, vector<8x8x8xf32>
    %100 = vector.shape_cast %99 : vector<8x8x8xf32> to vector<64x8xf32>
    %101 = arith.truncf %100 : vector<64x8xf32> to vector<64x8xbf16>
    %c8 = arith.constant 8 : index
    %c0_94 = arith.constant 0 : index
    %c0_95 = arith.constant 0 : index
    %102 = vector.load %arg4[%c8, %c0_94, %c0_95] : memref<9x8x128xbf16, #tpu.memory_space<vmem>>, vector<1x8x128xbf16>
    %103 = vector.shape_cast %102 : vector<1x8x128xbf16> to vector<8x128xbf16>
    %cst_96 = arith.constant dense<0.000000e+00> : vector<64x128xf32>
    %104 = tpu.matmul %101, %103, %cst_96 {dimension_numbers = #tpu.dot_dimension_numbers<[1], [0], [0], [1], [0, 0, 1, 1], [], []>} : vector<64x8xbf16>, vector<8x128xbf16>, vector<64x128xf32> -> vector<64x128xf32>
    %105 = arith.addf %98, %104 : vector<64x128xf32>
    %c0_97 = arith.constant 0 : index
    %c0_98 = arith.constant 0 : index
    %c0_99 = arith.constant 0 : index
    %c0_100 = arith.constant 0 : index
    %106 = vector.load %arg1[%c0_97, %c0_98, %c0_99, %c0_100] : memref<1x9x9x16xf32, #tpu.memory_space<vmem>>, vector<1x8x8x16xf32>
    %107 = vector.shape_cast %106 : vector<1x8x8x16xf32> to vector<8x8x16xf32>
    %108 = vector.shape_cast %107 : vector<8x8x16xf32> to vector<64x16xf32>
    %109 = arith.truncf %108 : vector<64x16xf32> to vector<64x16xbf16>
    %c0_101 = arith.constant 0 : index
    %c0_102 = arith.constant 0 : index
    %110 = vector.load %arg5[%c0_101, %c0_102] : memref<16x128xbf16, #tpu.memory_space<vmem>>, vector<16x128xbf16>
    %cst_103 = arith.constant dense<0.000000e+00> : vector<64x128xf32>
    %111 = tpu.matmul %109, %110, %cst_103 {dimension_numbers = #tpu.dot_dimension_numbers<[1], [0], [0], [1], [0, 0, 1, 1], [], []>} : vector<64x16xbf16>, vector<16x128xbf16>, vector<64x128xf32> -> vector<64x128xf32>
    %112 = arith.addf %105, %111 : vector<64x128xf32>
    %c0_104 = arith.constant 0 : index
    %c0_105 = arith.constant 0 : index
    %113 = vector.load %arg6[%c0_104, %c0_105] : memref<1x128xf32, #tpu.memory_space<vmem>>, vector<1x128xf32>
    %114 = vector.broadcast %113 : vector<1x128xf32> to vector<64x128xf32>
    %115 = arith.addf %112, %114 : vector<64x128xf32>
    %cst_106 = arith.constant 0.000000e+00 : f32
    %116 = vector.broadcast %cst_106 : f32 to vector<64x128xf32>
    %117 = arith.maximumf %115, %116 : vector<64x128xf32>
    %118 = vector.shape_cast %117 : vector<64x128xf32> to vector<8x8x128xf32>
    %c0_107 = arith.constant 0 : index
    %c0_108 = arith.constant 0 : index
    %c0_109 = arith.constant 0 : index
    %c0_110 = arith.constant 0 : index
    %119 = vector.load %arg7[%c0_107, %c0_108, %c0_109, %c0_110] : memref<1x8x8x128xf32, #tpu.memory_space<vmem>>, vector<1x8x8x128xf32>
    %120 = vector.shape_cast %119 : vector<1x8x8x128xf32> to vector<8x8x128xf32>
    %121 = vector.shape_cast %118 : vector<8x8x128xf32> to vector<1x8x8x128xf32>
    tpu.vector_store %arg7[%c0_107, %c0_108, %c0_109, %c0_110], %121 {strides = array<i32>} : memref<1x8x8x128xf32, #tpu.memory_space<vmem>>, vector<1x8x8x128xf32>,
    return
  }
  func.func @transform_0(%arg0: i32) -> (i32, i32, i32, i32) {
    %c0_i32 = arith.constant 0 : i32
    %c0_i32_0 = arith.constant 0 : i32
    %c0_i32_1 = arith.constant 0 : i32
    %c0_i32_2 = arith.constant 0 : i32
    return %arg0, %c0_i32, %c0_i32_0, %c0_i32_1 : i32, i32, i32, i32
  }
  func.func @transform_1(%arg0: i32) -> (i32, i32, i32) {
    %c0_i32 = arith.constant 0 : i32
    %c0_i32_0 = arith.constant 0 : i32
    %c0_i32_1 = arith.constant 0 : i32
    %c0_i32_2 = arith.constant 0 : i32
    return %c0_i32, %c0_i32_0, %c0_i32_1 : i32, i32, i32
  }
  func.func @transform_2(%arg0: i32) -> (i32, i32) {
    %c0_i32 = arith.constant 0 : i32
    %c0_i32_0 = arith.constant 0 : i32
    %c0_i32_1 = arith.constant 0 : i32
    return %c0_i32, %c0_i32_0 : i32, i32
  }
  func.func @transform_3(%arg0: i32) -> (i32, i32, i32) {
    %c0_i32 = arith.constant 0 : i32
    %c0_i32_0 = arith.constant 0 : i32
    %c0_i32_1 = arith.constant 0 : i32
    %c0_i32_2 = arith.constant 0 : i32
    return %c0_i32, %c0_i32_0, %c0_i32_1 : i32, i32, i32
  }
  func.func @transform_4(%arg0: i32) -> (i32, i32) {
    %c0_i32 = arith.constant 0 : i32
    %c0_i32_0 = arith.constant 0 : i32
    %c0_i32_1 = arith.constant 0 : i32
    return %c0_i32, %c0_i32_0 : i32, i32
  }
  func.func @transform_5(%arg0: i32) -> (i32, i32) {
    %c0_i32 = arith.constant 0 : i32
    %c0_i32_0 = arith.constant 0 : i32
    %c0_i32_1 = arith.constant 0 : i32
    return %c0_i32, %c0_i32_0 : i32, i32
  }
  func.func @transform_6(%arg0: i32) -> (i32, i32, i32, i32) {
    %c0_i32 = arith.constant 0 : i32
    %c0_i32_0 = arith.constant 0 : i32
    %c0_i32_1 = arith.constant 0 : i32
    %c0_i32_2 = arith.constant 0 : i32
    return %arg0, %c0_i32, %c0_i32_0, %c0_i32_1 : i32, i32, i32, i32
  }
}

</mosaic_0001>

<llo_original>
// kernel: resblock_forward.1
$region0: #{resblock_forward.1}
  #allocation0 [shape = 'u32[]', space=smem, size = 0x4, offset = 0x4, fixed_abs, tag = 'smem constant byte address 0x4 - core index']
  #allocation1 [shape = 'u32[72,128]{1,0:T(1,128)}', space=vmem, size = 0x9000, scoped, tag = 'internal scratch']
  #allocation2 [shape = 'f32[10,10,8]{2,1,0:T(8,128)}', space=vmem, size = 0x14000, scoped, tag = 'scratch operand']
  %s0 = inlined_call_operand.vmem [shape: f32[2,9,9,16], index: 0, kind: input, shape index: {}]
  %s1 = inlined_call_operand.vmem [shape: bf16[4,16,8], index: 1, kind: input, shape index: {}]
  %s2 = inlined_call_operand.vmem [shape: f32[1,8], index: 2, kind: input, shape index: {}]
  %s3 = inlined_call_operand.vmem [shape: bf16[9,8,128], index: 3, kind: input, shape index: {}]
  %s4 = inlined_call_operand.vmem [shape: bf16[16,128], index: 4, kind: input, shape index: {}]
  %s5 = inlined_call_operand.vmem [shape: f32[1,128], index: 5, kind: input, shape index: {}]
  %s6 = inlined_call_operand.vmem [shape: f32[2,8,8,128], index: 6, kind: output, shape index: {}]
  %s7 = sld [smem:[#allocation0]]
  $region57: #{resblock_forward.1} parent=0
    _
  %s9 = ssub.s32 1, %s7
  %s10 = scalar_select 0, %s9, %s7
  loop: start=0, step=1, limit=4
  $region2: #{resblock_forward.1} parent=0 // loop_pre_header
    _
  $region3: #{resblock_forward.1} parent=0 // loop_header
    %s12 = sphi 0, %s16
    %p13 = scmp.ge.s32.totalorder %s12, 4
    %s22 = sphi 0, %s24
    %s25 = sphi 0, %s22
    %s26 = sphi 0, %s25
    %s42 = sphi 0, %s26
    %s46 = sphi 0, %s46
    %s48 = sphi 0, %s46
    %s49 = sphi 0, %s48
    %s63 = sphi 0, %s49
    %s67 = sphi 0, %s67
    %s69 = sphi 0, %s67
    %s70 = sphi 0, %s69
    %s84 = sphi 0, %s70
    %s88 = sphi 0, %s88
    %s90 = sphi 0, %s88
    %s91 = sphi 0, %s90
    %s105 = sphi 0, %s91
    %s109 = sphi 0, %s109
    %s111 = sphi 0, %s109
    %s112 = sphi 0, %s111
    %s126 = sphi 0, %s112
    %s130 = sphi 0, %s130
    %s132 = sphi 0, %s130
    %s133 = sphi 0, %s132
    %s147 = sphi 0, %s133
    %s153 = sphi 0, %s155
    %s156 = sphi 0, %s153
    %s157 = sphi 0, %s156
    %s173 = sphi 0, %s157
  $region4: #{resblock_forward.1} parent=0 // loop_header_branch
    %15 = sbr.rel (%p13) target = $region8
  $region5: #{resblock_forward.1} parent=0 // loop_body
    %s17 = ssub.s32 %s12, 1
    %s18 = ssub.s32 %s12, 2
    %s19 = sadd.s32 %s12, 1
    %s20 = ssub.s32 %s12, %s19
    %p21 = scmp.eq.s32.totalorder %s20, 0
    %s23 = sadd.s32 %s22, 1
    %s24 = scalar_select %p21, %s22, %s23
    %p27 = pneg %p21
    %p28 = scmp.eq.s32.totalorder %s12, 1
    %p29 = por %p27, %p28
    %p30 = scmp.ne.s32.totalorder %s22, %s25
    %p31 = scmp.eq.s32.totalorder %s12, 0
    %p32 = por %p30, %p31
    %p33 = scmp.ne.s32.totalorder %s22, %s25
    %p34 = scmp.eq.s32.totalorder %s17, 1
    %p35 = por %p33, %p34
    %p36 = scmp.ne.s32.totalorder %s25, %s26
    %p37 = scmp.eq.s32.totalorder %s17, 0
    %p38 = por %p36, %p37
    %p39 = scmp.ne.s32.totalorder %s25, %s26
    %p40 = scmp.eq.s32.totalorder %s18, 1
    %p41 = por %p39, %p40
    %p43 = scmp.ne.s32.totalorder %s26, %s42
    %p44 = scmp.eq.s32.totalorder %s18, 0
    %p45 = por %p43, %p44
    %s47 = sadd.s32 %s46, 1
    %p50 = scmp.eq.s32.totalorder %s12, 1
    %p51 = scmp.ne.s32.totalorder %s46, %s48
    %p52 = scmp.eq.s32.totalorder %s12, 0
    %p53 = por %p51, %p52
    %p54 = scmp.ne.s32.totalorder %s46, %s48
    %p55 = scmp.eq.s32.totalorder %s17, 1
    %p56 = por %p54, %p55
    %p57 = scmp.ne.s32.totalorder %s48, %s49
    %p58 = scmp.eq.s32.totalorder %s17, 0
    %p59 = por %p57, %p58
    %p60 = scmp.ne.s32.totalorder %s48, %s49
    %p61 = scmp.eq.s32.totalorder %s18, 1
    %p62 = por %p60, %p61
    %p64 = scmp.ne.s32.totalorder %s49, %s63
    %p65 = scmp.eq.s32.totalorder %s18, 0
    %p66 = por %p64, %p65
    %s68 = sadd.s32 %s67, 1
    %p71 = scmp.eq.s32.totalorder %s12, 1
    %p72 = scmp.ne.s32.totalorder %s67, %s69
    %p73 = scmp.eq.s32.totalorder %s12, 0
    %p74 = por %p72, %p73
    %p75 = scmp.ne.s32.totalorder %s67, %s69
    %p76 = scmp.eq.s32.totalorder %s17, 1
    %p77 = por %p75, %p76
    %p78 = scmp.ne.s32.totalorder %s69, %s70
    %p79 = scmp.eq.s32.totalorder %s17, 0
    %p80 = por %p78, %p79
    %p81 = scmp.ne.s32.totalorder %s69, %s70
    %p82 = scmp.eq.s32.totalorder %s18, 1
    %p83 = por %p81, %p82
    %p85 = scmp.ne.s32.totalorder %s70, %s84
    %p86 = scmp.eq.s32.totalorder %s18, 0
    %p87 = por %p85, %p86
    %s89 = sadd.s32 %s88, 1
    %p92 = scmp.eq.s32.totalorder %s12, 1
    %p93 = scmp.ne.s32.totalorder %s88, %s90
    %p94 = scmp.eq.s32.totalorder %s12, 0
    %p95 = por %p93, %p94
    %p96 = scmp.ne.s32.totalorder %s88, %s90
    %p97 = scmp.eq.s32.totalorder %s17, 1
    %p98 = por %p96, %p97
    %p99 = scmp.ne.s32.totalorder %s90, %s91
    %p100 = scmp.eq.s32.totalorder %s17, 0
    %p101 = por %p99, %p100
    %p102 = scmp.ne.s32.totalorder %s90, %s91
    %p103 = scmp.eq.s32.totalorder %s18, 1
    %p104 = por %p102, %p103
    %p106 = scmp.ne.s32.totalorder %s91, %s105
    %p107 = scmp.eq.s32.totalorder %s18, 0
    %p108 = por %p106, %p107
    %s110 = sadd.s32 %s109, 1
    %p113 = scmp.eq.s32.totalorder %s12, 1
    %p114 = scmp.ne.s32.totalorder %s109, %s111
    %p115 = scmp.eq.s32.totalorder %s12, 0
    %p116 = por %p114, %p115
    %p117 = scmp.ne.s32.totalorder %s109, %s111
    %p118 = scmp.eq.s32.totalorder %s17, 1
    %p119 = por %p117, %p118
    %p120 = scmp.ne.s32.totalorder %s111, %s112
    %p121 = scmp.eq.s32.totalorder %s17, 0
    %p122 = por %p120, %p121
    %p123 = scmp.ne.s32.totalorder %s111, %s112
    %p124 = scmp.eq.s32.totalorder %s18, 1
    %p125 = por %p123, %p124
    %p127 = scmp.ne.s32.totalorder %s112, %s126
    %p128 = scmp.eq.s32.totalorder %s18, 0
    %p129 = por %p127, %p128
    %s131 = sadd.s32 %s130, 1
    %p134 = scmp.eq.s32.totalorder %s12, 1
    %p135 = scmp.ne.s32.totalorder %s130, %s132
    %p136 = scmp.eq.s32.totalorder %s12, 0
    %p137 = por %p135, %p136
    %p138 = scmp.ne.s32.totalorder %s130, %s132
    %p139 = scmp.eq.s32.totalorder %s17, 1
    %p140 = por %p138, %p139
    %p141 = scmp.ne.s32.totalorder %s132, %s133
    %p142 = scmp.eq.s32.totalorder %s17, 0
    %p143 = por %p141, %p142
    %p144 = scmp.ne.s32.totalorder %s132, %s133
    %p145 = scmp.eq.s32.totalorder %s18, 1
    %p146 = por %p144, %p145
    %p148 = scmp.ne.s32.totalorder %s133, %s147
    %p149 = scmp.eq.s32.totalorder %s18, 0
    %p150 = por %p148, %p149
    %s151 = ssub.s32 %s12, %s19
    %p152 = scmp.eq.s32.totalorder %s151, 0
    %s154 = sadd.s32 %s153, 1
    %s155 = scalar_select %p152, %s153, %s154
    %p158 = pneg %p152
    %p159 = scmp.eq.s32.totalorder %s12, 1
    %p160 = por %p158, %p159
    %p161 = scmp.ne.s32.totalorder %s153, %s156
    %p162 = scmp.eq.s32.totalorder %s12, 0
    %p163 = por %p161, %p162
    %p164 = scmp.ne.s32.totalorder %s153, %s156
    %p165 = scmp.eq.s32.totalorder %s17, 1
    %p166 = por %p164, %p165
    %p167 = scmp.ne.s32.totalorder %s156, %s157
    %p168 = scmp.eq.s32.totalorder %s17, 0
    %p169 = por %p167, %p168
    %p170 = scmp.ne.s32.totalorder %s156, %s157
    %p171 = scmp.eq.s32.totalorder %s18, 1
    %p172 = por %p170, %p171
    %p174 = scmp.ne.s32.totalorder %s157, %s173
    %p175 = scmp.eq.s32.totalorder %s18, 0
    %p176 = por %p174, %p175
    %p177 = scmp.le.s32.totalorder 1, %s12
    %p178 = scmp.lt.s32.totalorder %s12, 3
    %p179 = pnand %p177, %p178
    %p180 = pneg %p179
    // Predicated region
    $region9: #{resblock_forward.1} parent=5 // pred_check
      _
    $region10: #{resblock_forward.1} parent=5 // pred_check_branch
      %182 = sbr.rel (%p179) target = $region12
    $region11: #{resblock_forward.1} parent=5 // pred_region
      %s183 = ssub.s32 %s12, 1
      // Predicated region
      $region13: #{resblock_forward.1} parent=11 // pred_check
        %p184 = pneg %p59
      $region14: #{resblock_forward.1} parent=11 // pred_check_branch
        %186 = sbr.rel (%p184) target = $region16
      $region15: #{resblock_forward.1} parent=11 // pred_region
        _
      $region16: #{resblock_forward.1} parent=11 // pred_fallthru
        _
      // Predicated region
      $region17: #{resblock_forward.1} parent=11 // pred_check
        %p187 = pneg %p80
      $region18: #{resblock_forward.1} parent=11 // pred_check_branch
        %189 = sbr.rel (%p187) target = $region20
      $region19: #{resblock_forward.1} parent=11 // pred_region
        _
      $region20: #{resblock_forward.1} parent=11 // pred_fallthru
        _
      // Predicated region
      $region21: #{resblock_forward.1} parent=11 // pred_check
        %p190 = pneg %p101
      $region22: #{resblock_forward.1} parent=11 // pred_check_branch
        %192 = sbr.rel (%p190) target = $region24
      $region23: #{resblock_forward.1} parent=11 // pred_region
        _
      $region24: #{resblock_forward.1} parent=11 // pred_fallthru
        _
      // Predicated region
      $region25: #{resblock_forward.1} parent=11 // pred_check
        %p193 = pneg %p122
      $region26: #{resblock_forward.1} parent=11 // pred_check_branch
        %195 = sbr.rel (%p193) target = $region28
      $region27: #{resblock_forward.1} parent=11 // pred_region
        _
      $region28: #{resblock_forward.1} parent=11 // pred_fallthru
        _
      // Predicated region
      $region29: #{resblock_forward.1} parent=11 // pred_check
        %p196 = pneg %p143
      $region30: #{resblock_forward.1} parent=11 // pred_check_branch
        %198 = sbr.rel (%p196) target = $region32
      $region31: #{resblock_forward.1} parent=11 // pred_region
        _
      $region32: #{resblock_forward.1} parent=11 // pred_fallthru
        _
    $region12: #{resblock_forward.1} parent=5 // pred_fallthru
      _
    %p199 = scmp.lt.s32.totalorder %s12, 2
    // Predicated region
    $region33: #{resblock_forward.1} parent=5 // pred_check
      %p200 = pneg %p199
    $region34: #{resblock_forward.1} parent=5 // pred_check_branch
      %202 = sbr.rel (%p200) target = $region36
    $region35: #{resblock_forward.1} parent=5 // pred_region
      // Predicated region
      $region37: #{resblock_forward.1} parent=35 // pred_check
        %p203 = pneg %p32
      $region38: #{resblock_forward.1} parent=35 // pred_check_branch
        %205 = sbr.rel (%p203) target = $region40
      $region39: #{resblock_forward.1} parent=35 // pred_region
        %p206 = scmp.lt.s32.totalorder %s12, 1
        %s207 = scalar_select %p206, %s12, 1
        %s208 = smul.addr %s207, 18
        %s209 = smul.addr %s208, 8
        %s210 = scalar_lea.vmem %s0, %s209
      $region40: #{resblock_forward.1} parent=35 // pred_fallthru
        _
    $region36: #{resblock_forward.1} parent=5 // pred_fallthru
      _
    %p211 = scmp.le.s32.totalorder 1, %s12
    %p212 = scmp.lt.s32.totalorder %s12, 3
    %p213 = pnand %p211, %p212
    %p214 = pneg %p213
    // Predicated region
    $region41: #{resblock_forward.1} parent=5 // pred_check
      _
    $region42: #{resblock_forward.1} parent=5 // pred_check_branch
      %216 = sbr.rel (%p213) target = $region44
    $region43: #{resblock_forward.1} parent=5 // pred_region
      %s217 = ssub.s32 %s12, 1
      %p218 = scmp.lt.s32.totalorder %s17, 1
      %s219 = scalar_select %p218, %s17, 1
      %s220 = smul.addr %s219, 18
      %s221 = smul.addr %s220, 8
      %s222 = scalar_lea.vmem %s0, %s221
      %p223 = pneg %p38
      %p224 = pneg %p35
      %p225 = pneg %p59
      %p226 = pneg %p56
      %p227 = pneg %p80
      %p228 = pneg %p77
      %p229 = pneg %p101
      %p230 = pneg %p98
      %p231 = pneg %p122
      %p232 = pneg %p119
      %p233 = pneg %p143
      %p234 = pneg %p140
      %p235 = pneg %p169
      %p236 = pneg %p166
      %p237 = scmp.lt.s32.totalorder %s17, 1
      %s238 = scalar_select %p237, %s17, 1
      %s239 = smul.addr %s238, 8
      %s240 = smul.addr %s239, 8
      %s241 = scalar_lea.vmem %s6, %s240
      %p242 = scmp.lt.s32.totalorder %s17, 1
      %s243 = scalar_select %p242, %s17, 1
      %s244 = smul.addr %s243, 18
      %s245 = smul.addr %s244, 8
      %s246 = scalar_lea.vmem %s0, %s245
      %p247 = scmp.lt.s32.totalorder %s17, 1
      %s248 = scalar_select %p247, %s17, 1
      %s249 = smul.addr %s248, 8
      %s250 = smul.addr %s249, 8
      %s251 = scalar_lea.vmem %s6, %s250
      %v253 = vld [vmem:[%s246] sm:$0xff]
      %v254 = vld [vmem:[%s246 + $0x10] sm:$0xff]
      %v255 = vld [vmem:[%s246 + $0x20] sm:$0xff]
      %v256 = vld [vmem:[%s246 + $0x30] sm:$0xff]
      %v257 = vld [vmem:[%s246 + $0x40] sm:$0xff]
      %v258 = vld [vmem:[%s246 + $0x50] sm:$0xff]
      %v259 = vld [vmem:[%s246 + $0x60] sm:$0xff]
      %v260 = vld [vmem:[%s246 + $0x70] sm:$0xff]
      %v261 = vpack.c.bf16 %v254, %v253
      %v262 = vpack.c.bf16 %v256, %v255
      %v263 = vpack.c.bf16 %v258, %v257
      %v264 = vpack.c.bf16 %v260, %v259
      %v265 = vld [vmem:[%s1] sm:$0xf]
      %v266 = vld [vmem:[%s1 + $0x4] sm:$0xf]
      %v267 = vld [vmem:[%s246 + $0x1] sm:$0xff]
      %v268 = vld [vmem:[%s246 + $0x11] sm:$0xff]
      %v269 = vld [vmem:[%s246 + $0x21] sm:$0xff]
      %v270 = vld [vmem:[%s246 + $0x31] sm:$0xff]
      %v271 = vld [vmem:[%s246 + $0x41] sm:$0xff]
      %v272 = vld [vmem:[%s246 + $0x51] sm:$0xff]
      %v273 = vld [vmem:[%s246 + $0x61] sm:$0xff]
      %v274 = vld [vmem:[%s246 + $0x71] sm:$0xff]
      %v275 = vpack.c.bf16 %v268, %v267
      %v276 = vpack.c.bf16 %v270, %v269
      %v277 = vpack.c.bf16 %v272, %v271
      %v278 = vpack.c.bf16 %v274, %v273
      %s279 = scalar_lea.vmem %s1, 8
      %v280 = vld [vmem:[%s279] sm:$0xf]
      %v281 = vld [vmem:[%s279 + $0x4] sm:$0xf]
      %v284 = vunpack.c.l.b16 %v280
      %v285 = vunpack.c.l.b16 %v281
      %v286 = vpack.c.b16 %v285, %v284
      %vm288 = vcmask 130048
      %v290 = vsel %vm288, %v275, 0
      %v293 = vsel %vm288, %v276, 0
      %v296 = vsel %vm288, %v277, 0
      %v299 = vsel %vm288, %v278, 0
      %301 = vmatpush.bf16.msra.mxu0 0
      %302 = vmatpush.bf16.msra.mxu0 0
      %303 = vmatpush.bf16.msra.mxu0 0
      %304 = vmatpush.bf16.msra.mxu0 0
      %305 = vmatpush.bf16.msra.mxu0 0
      %306 = vmatpush.bf16.msra.mxu0 0
      %307 = vmatpush.bf16.msra.mxu0 0
      %308 = vmatpush.bf16.msra.mxu0 %v286
      %309 = vmatmul.bf16.gmra.mxu0 %v290
      %v310 = vpop.f32.mrf.mxu0
      %v311 = vadd.f32 0.0, %v310
      %v312 = vpop.f32.mrf.mxu0
      %v313 = vadd.f32 0.0, %v312
      %314 = vmatmul.bf16.gmra.mxu0 %v293
      %v315 = vpop.f32.mrf.mxu0
      %v316 = vadd.f32 0.0, %v315
      %v317 = vpop.f32.mrf.mxu0
      %v318 = vadd.f32 0.0, %v317
      %319 = vmatmul.bf16.gmra.mxu0 %v296
      %v320 = vpop.f32.mrf.mxu0
      %v321 = vadd.f32 0.0, %v320
      %v322 = vpop.f32.mrf.mxu0
      %v323 = vadd.f32 0.0, %v322
      %324 = vmatmul.bf16.gmra.mxu0 %v299
      %v325 = vpop.f32.mrf.mxu0
      %v326 = vadd.f32 0.0, %v325
      %v327 = vpop.f32.mrf.mxu0
      %v328 = vadd.f32 0.0, %v327
      %329 = vdwg.mxu0
      %v332 = vunpack.c.l.b16 %v265
      %v333 = vunpack.c.l.b16 %v266
      %v334 = vpack.c.b16 %v333, %v332
      %v337 = vsel %vm288, %v261, 0
      %v340 = vsel %vm288, %v262, 0
      %v343 = vsel %vm288, %v263, 0
      %v346 = vsel %vm288, %v264, 0
      %348 = vmatpush.bf16.msra.mxu0 0
      %349 = vmatpush.bf16.msra.mxu0 0
      %350 = vmatpush.bf16.msra.mxu0 0
      %351 = vmatpush.bf16.msra.mxu0 0
      %352 = vmatpush.bf16.msra.mxu0 0
      %353 = vmatpush.bf16.msra.mxu0 0
      %354 = vmatpush.bf16.msra.mxu0 0
      %355 = vmatpush.bf16.msra.mxu0 %v334
      %356 = vmatmul.bf16.gmra.mxu0 %v337
      %v357 = vpop.f32.mrf.mxu0
      %v358 = vadd.f32 %v311, %v357
      %v359 = vpop.f32.mrf.mxu0
      %v360 = vadd.f32 %v313, %v359
      %361 = vmatmul.bf16.gmra.mxu0 %v340
      %v362 = vpop.f32.mrf.mxu0
      %v363 = vadd.f32 %v316, %v362
      %v364 = vpop.f32.mrf.mxu0
      %v365 = vadd.f32 %v318, %v364
      %366 = vmatmul.bf16.gmra.mxu0 %v343
      %v367 = vpop.f32.mrf.mxu0
      %v368 = vadd.f32 %v321, %v367
      %v369 = vpop.f32.mrf.mxu0
      %v370 = vadd.f32 %v323, %v369
      %371 = vmatmul.bf16.gmra.mxu0 %v346
      %v372 = vpop.f32.mrf.mxu0
      %v373 = vadd.f32 %v326, %v372
      %v374 = vpop.f32.mrf.mxu0
      %v375 = vadd.f32 %v328, %v374
      %376 = vdwg.mxu0
      %s377 = scalar_lea.vmem %s246, 16
      %v378 = vld [vmem:[%s377] sm:$0xff]
      %v379 = vld [vmem:[%s377 + $0x10] sm:$0xff]
      %v380 = vld [vmem:[%s377 + $0x20] sm:$0xff]
      %v381 = vld [vmem:[%s377 + $0x30] sm:$0xff]
      %v382 = vld [vmem:[%s377 + $0x40] sm:$0xff]
      %v383 = vld [vmem:[%s377 + $0x50] sm:$0xff]
      %v384 = vld [vmem:[%s377 + $0x60] sm:$0xff]
      %v385 = vld [vmem:[%s377 + $0x70] sm:$0xff]
      %v386 = vpack.c.bf16 %v379, %v378
      %v387 = vpack.c.bf16 %v381, %v380
      %v388 = vpack.c.bf16 %v383, %v382
      %v389 = vpack.c.bf16 %v385, %v384
      %s390 = scalar_lea.vmem %s1, 16
      %v391 = vld [vmem:[%s390] sm:$0xf]
      %v392 = vld [vmem:[%s390 + $0x4] sm:$0xf]
      %v395 = vunpack.c.l.b16 %v391
      %v396 = vunpack.c.l.b16 %v392
      %v397 = vpack.c.b16 %v396, %v395
      %v400 = vsel %vm288, %v386, 0
      %v403 = vsel %vm288, %v387, 0
      %v406 = vsel %vm288, %v388, 0
      %v409 = vsel %vm288, %v389, 0
      %411 = vmatpush.bf16.msra.mxu0 0
      %412 = vmatpush.bf16.msra.mxu0 0
      %413 = vmatpush.bf16.msra.mxu0 0
      %414 = vmatpush.bf16.msra.mxu0 0
      %415 = vmatpush.bf16.msra.mxu0 0
      %416 = vmatpush.bf16.msra.mxu0 0
      %417 = vmatpush.bf16.msra.mxu0 0
      %418 = vmatpush.bf16.msra.mxu0 %v397
      %419 = vmatmul.bf16.gmra.mxu0 %v400
      %v420 = vpop.f32.mrf.mxu0
      %v421 = vadd.f32 0.0, %v420
      %v422 = vpop.f32.mrf.mxu0
      %v423 = vadd.f32 0.0, %v422
      %424 = vmatmul.bf16.gmra.mxu0 %v403
      %v425 = vpop.f32.mrf.mxu0
      %v426 = vadd.f32 0.0, %v425
      %v427 = vpop.f32.mrf.mxu0
      %v428 = vadd.f32 0.0, %v427
      %429 = vmatmul.bf16.gmra.mxu0 %v406
      %v430 = vpop.f32.mrf.mxu0
      %v431 = vadd.f32 0.0, %v430
      %v432 = vpop.f32.mrf.mxu0
      %v433 = vadd.f32 0.0, %v432
      %434 = vmatmul.bf16.gmra.mxu0 %v409
      %v435 = vpop.f32.mrf.mxu0
      %v436 = vadd.f32 0.0, %v435
      %v437 = vpop.f32.mrf.mxu0
      %v438 = vadd.f32 0.0, %v437
      %439 = vdwg.mxu0
      %v440 = vadd.f32 %v358, %v421
      %v441 = vadd.f32 %v360, %v423
      %v442 = vadd.f32 %v363, %v426
      %v443 = vadd.f32 %v365, %v428
      %v444 = vadd.f32 %v368, %v431
      %v445 = vadd.f32 %v370, %v433
      %v446 = vadd.f32 %v373, %v436
      %v447 = vadd.f32 %v375, %v438
      %v448 = vld [vmem:[%s377 + $0x1] sm:$0xff]
      %v449 = vld [vmem:[%s377 + $0x11] sm:$0xff]
      %v450 = vld [vmem:[%s377 + $0x21] sm:$0xff]
      %v451 = vld [vmem:[%s377 + $0x31] sm:$0xff]
      %v452 = vld [vmem:[%s377 + $0x41] sm:$0xff]
      %v453 = vld [vmem:[%s377 + $0x51] sm:$0xff]
      %v454 = vld [vmem:[%s377 + $0x61] sm:$0xff]
      %v455 = vld [vmem:[%s377 + $0x71] sm:$0xff]
      %v456 = vpack.c.bf16 %v449, %v448
      %v457 = vpack.c.bf16 %v451, %v450
      %v458 = vpack.c.bf16 %v453, %v452
      %v459 = vpack.c.bf16 %v455, %v454
      %s460 = scalar_lea.vmem %s1, 24
      %v461 = vld [vmem:[%s460] sm:$0xf]
      %v462 = vld [vmem:[%s460 + $0x4] sm:$0xf]
      %v465 = vunpack.c.l.b16 %v461
      %v466 = vunpack.c.l.b16 %v462
      %v467 = vpack.c.b16 %v466, %v465
      %v470 = vsel %vm288, %v456, 0
      %v473 = vsel %vm288, %v457, 0
      %v476 = vsel %vm288, %v458, 0
      %v479 = vsel %vm288, %v459, 0
      %481 = vmatpush.bf16.msra.mxu0 0
      %482 = vmatpush.bf16.msra.mxu0 0
      %483 = vmatpush.bf16.msra.mxu0 0
      %484 = vmatpush.bf16.msra.mxu0 0
      %485 = vmatpush.bf16.msra.mxu0 0
      %486 = vmatpush.bf16.msra.mxu0 0
      %487 = vmatpush.bf16.msra.mxu0 0
      %488 = vmatpush.bf16.msra.mxu0 %v467
      %489 = vmatmul.bf16.gmra.mxu0 %v470
      %v490 = vpop.f32.mrf.mxu0
      %v491 = vadd.f32 0.0, %v490
      %v492 = vpop.f32.mrf.mxu0
      %v493 = vadd.f32 0.0, %v492
      %494 = vmatmul.bf16.gmra.mxu0 %v473
      %v495 = vpop.f32.mrf.mxu0
      %v496 = vadd.f32 0.0, %v495
      %v497 = vpop.f32.mrf.mxu0
      %v498 = vadd.f32 0.0, %v497
      %499 = vmatmul.bf16.gmra.mxu0 %v476
      %v500 = vpop.f32.mrf.mxu0
      %v501 = vadd.f32 0.0, %v500
      %v502 = vpop.f32.mrf.mxu0
      %v503 = vadd.f32 0.0, %v502
      %504 = vmatmul.bf16.gmra.mxu0 %v479
      %v505 = vpop.f32.mrf.mxu0
      %v506 = vadd.f32 0.0, %v505
      %v507 = vpop.f32.mrf.mxu0
      %v508 = vadd.f32 0.0, %v507
      %509 = vdwg.mxu0
      %v510 = vadd.f32 %v440, %v491
      %v511 = vadd.f32 %v441, %v493
      %v512 = vadd.f32 %v442, %v496
      %v513 = vadd.f32 %v443, %v498
      %v514 = vadd.f32 %v444, %v501
      %v515 = vadd.f32 %v445, %v503
      %v516 = vadd.f32 %v446, %v506
      %v517 = vadd.f32 %v447, %v508
      %v518 = vld [vmem:[%s2] sm:$0x1]
      %v520 = vperm.slane %v518, 0
      %v522 = vadd.f32 %v510, %v520
      %v523 = vadd.f32 %v511, %v520
      %v524 = vadd.f32 %v512, %v520
      %v525 = vadd.f32 %v513, %v520
      %v526 = vadd.f32 %v514, %v520
      %v527 = vadd.f32 %v515, %v520
      %v528 = vadd.f32 %v516, %v520
      %v529 = vadd.f32 %v517, %v520
      %v530 = vmax.f32 %v522, 0.0
      %v531 = vmax.f32 %v523, 0.0
      %v532 = vmax.f32 %v524, 0.0
      %v533 = vmax.f32 %v525, 0.0
      %v534 = vmax.f32 %v526, 0.0
      %v535 = vmax.f32 %v527, 0.0
      %v536 = vmax.f32 %v528, 0.0
      %v537 = vmax.f32 %v529, 0.0
      %vm538 = vcmask 64512
      %539 = vst.msk [vmem:[#allocation2] sm:$0xff] %vm538, 0.0
      %vm540 = vcmask 58368
      %541 = vst.msk [vmem:[#allocation2 + $0x8] sm:$0x3] %vm540, 0.0
      %542 = vst.msk [vmem:[#allocation2 + $0x10] sm:$0xff] %vm538, 0.0
      %543 = vst.msk [vmem:[#allocation2 + $0x18] sm:$0x3] %vm540, 0.0
      %544 = vst.msk [vmem:[#allocation2 + $0x20] sm:$0xff] %vm538, 0.0
      %545 = vst.msk [vmem:[#allocation2 + $0x28] sm:$0x3] %vm540, 0.0
      %546 = vst.msk [vmem:[#allocation2 + $0x30] sm:$0xff] %vm538, 0.0
      %547 = vst.msk [vmem:[#allocation2 + $0x38] sm:$0x3] %vm540, 0.0
      %548 = vst.msk [vmem:[#allocation2 + $0x40] sm:$0xff] %vm538, 0.0
      %549 = vst.msk [vmem:[#allocation2 + $0x48] sm:$0x3] %vm540, 0.0
      %550 = vst.msk [vmem:[#allocation2 + $0x50] sm:$0xff] %vm538, 0.0
      %551 = vst.msk [vmem:[#allocation2 + $0x58] sm:$0x3] %vm540, 0.0
      %552 = vst.msk [vmem:[#allocation2 + $0x60] sm:$0xff] %vm538, 0.0
      %553 = vst.msk [vmem:[#allocation2 + $0x68] sm:$0x3] %vm540, 0.0
      %554 = vst.msk [vmem:[#allocation2 + $0x70] sm:$0xff] %vm538, 0.0
      %555 = vst.msk [vmem:[#allocation2 + $0x78] sm:$0x3] %vm540, 0.0
      %556 = vst.msk [vmem:[#allocation2 + $0x80] sm:$0xff] %vm538, 0.0
      %557 = vst.msk [vmem:[#allocation2 + $0x88] sm:$0x3] %vm540, 0.0
      %558 = vst.msk [vmem:[#allocation2 + $0x90] sm:$0xff] %vm538, 0.0
      %559 = vst.msk [vmem:[#allocation2 + $0x98] sm:$0x3] %vm540, 0.0
      %s560 = scalar_lea.vmem [#allocation2], 16
      %561 = vst.msk [vmem:[%s560 + $0x1] sm:$0xff] %vm538, %v530
      %562 = vst.msk [vmem:[%s560 + $0x11] sm:$0xff] %vm538, %v531
      %563 = vst.msk [vmem:[%s560 + $0x21] sm:$0xff] %vm538, %v532
      %564 = vst.msk [vmem:[%s560 + $0x31] sm:$0xff] %vm538, %v533
      %565 = vst.msk [vmem:[%s560 + $0x41] sm:$0xff] %vm538, %v534
      %566 = vst.msk [vmem:[%s560 + $0x51] sm:$0xff] %vm538, %v535
      %567 = vst.msk [vmem:[%s560 + $0x61] sm:$0xff] %vm538, %v536
      %568 = vst.msk [vmem:[%s560 + $0x71] sm:$0xff] %vm538, %v537
      %v569 = vld [vmem:[#allocation2] sm:$0xff]
      %v570 = vld [vmem:[#allocation2 + $0x10] sm:$0xff]
      %v571 = vld [vmem:[#allocation2 + $0x20] sm:$0xff]
      %v572 = vld [vmem:[#allocation2 + $0x30] sm:$0xff]
      %v573 = vld [vmem:[#allocation2 + $0x40] sm:$0xff]
      %v574 = vld [vmem:[#allocation2 + $0x50] sm:$0xff]
      %v575 = vld [vmem:[#allocation2 + $0x60] sm:$0xff]
      %v576 = vld [vmem:[#allocation2 + $0x70] sm:$0xff]
      %v577 = vpack.c.bf16 %v570, %v569
      %v578 = vpack.c.bf16 %v572, %v571
      %v579 = vpack.c.bf16 %v574, %v573
      %v580 = vpack.c.bf16 %v576, %v575
      %v581 = vld [vmem:[%s3] sm:$0xf]
      %v582 = vld [vmem:[#allocation2 + $0x1] sm:$0xff]
      %v583 = vld [vmem:[#allocation2 + $0x11] sm:$0xff]
      %v584 = vld [vmem:[#allocation2 + $0x21] sm:$0xff]
      %v585 = vld [vmem:[#allocation2 + $0x31] sm:$0xff]
      %v586 = vld [vmem:[#allocation2 + $0x41] sm:$0xff]
      %v587 = vld [vmem:[#allocation2 + $0x51] sm:$0xff]
      %v588 = vld [vmem:[#allocation2 + $0x61] sm:$0xff]
      %v589 = vld [vmem:[#allocation2 + $0x71] sm:$0xff]
      %v590 = vpack.c.bf16 %v583, %v582
      %v591 = vpack.c.bf16 %v585, %v584
      %v592 = vpack.c.bf16 %v587, %v586
      %v593 = vpack.c.bf16 %v589, %v588
      %s594 = scalar_lea.vmem %s3, 4
      %v595 = vld [vmem:[%s594] sm:$0xf]
      %v597 = vsel %vm538, %v590, 0
      %v600 = vsel %vm538, %v591, 0
      %v603 = vsel %vm538, %v592, 0
      %v606 = vsel %vm538, %v593, 0
      %vm608 = vcmask 1043456
      %v610 = vsel %vm608, %v595, 0
      %612 = vmatpush.bf16.msra.mxu0 0
      %613 = vmatpush.bf16.msra.mxu0 0
      %614 = vmatpush.bf16.msra.mxu0 0
      %615 = vmatpush.bf16.msra.mxu0 0
      %616 = vmatpush.bf16.msra.mxu0 0
      %617 = vmatpush.bf16.msra.mxu0 0
      %618 = vmatpush.bf16.msra.mxu0 0
      %619 = vmatpush.bf16.msra.mxu0 %v610
      %620 = vmatmul.bf16.gmra.mxu0 %v597
      %v621 = vpop.f32.mrf.mxu0
      %v622 = vadd.f32 0.0, %v621
      %v623 = vpop.f32.mrf.mxu0
      %v624 = vadd.f32 0.0, %v623
      %625 = vmatmul.bf16.gmra.mxu0 %v600
      %v626 = vpop.f32.mrf.mxu0
      %v627 = vadd.f32 0.0, %v626
      %v628 = vpop.f32.mrf.mxu0
      %v629 = vadd.f32 0.0, %v628
      %630 = vmatmul.bf16.gmra.mxu0 %v603
      %v631 = vpop.f32.mrf.mxu0
      %v632 = vadd.f32 0.0, %v631
      %v633 = vpop.f32.mrf.mxu0
      %v634 = vadd.f32 0.0, %v633
      %635 = vmatmul.bf16.gmra.mxu0 %v606
      %v636 = vpop.f32.mrf.mxu0
      %v637 = vadd.f32 0.0, %v636
      %v638 = vpop.f32.mrf.mxu0
      %v639 = vadd.f32 0.0, %v638
      %640 = vdwg.mxu0
      %v642 = vsel %vm538, %v577, 0
      %v645 = vsel %vm538, %v578, 0
      %v648 = vsel %vm538, %v579, 0
      %v651 = vsel %vm538, %v580, 0
      %v654 = vsel %vm608, %v581, 0
      %656 = vmatpush.bf16.msra.mxu0 0
      %657 = vmatpush.bf16.msra.mxu0 0
      %658 = vmatpush.bf16.msra.mxu0 0
      %659 = vmatpush.bf16.msra.mxu0 0
      %660 = vmatpush.bf16.msra.mxu0 0
      %661 = vmatpush.bf16.msra.mxu0 0
      %662 = vmatpush.bf16.msra.mxu0 0
      %663 = vmatpush.bf16.msra.mxu0 %v654
      %664 = vmatmul.bf16.gmra.mxu0 %v642
      %v665 = vpop.f32.mrf.mxu0
      %v666 = vadd.f32 %v622, %v665
      %v667 = vpop.f32.mrf.mxu0
      %v668 = vadd.f32 %v624, %v667
      %669 = vmatmul.bf16.gmra.mxu0 %v645
      %v670 = vpop.f32.mrf.mxu0
      %v671 = vadd.f32 %v627, %v670
      %v672 = vpop.f32.mrf.mxu0
      %v673 = vadd.f32 %v629, %v672
      %674 = vmatmul.bf16.gmra.mxu0 %v648
      %v675 = vpop.f32.mrf.mxu0
      %v676 = vadd.f32 %v632, %v675
      %v677 = vpop.f32.mrf.mxu0
      %v678 = vadd.f32 %v634, %v677
      %679 = vmatmul.bf16.gmra.mxu0 %v651
      %v680 = vpop.f32.mrf.mxu0
      %v681 = vadd.f32 %v637, %v680
      %v682 = vpop.f32.mrf.mxu0
      %v683 = vadd.f32 %v639, %v682
      %684 = vdwg.mxu0
      %v685 = vld [vmem:[#allocation2 + $0x2] sm:$0xff]
      %v686 = vld [vmem:[#allocation2 + $0x12] sm:$0xff]
      %v687 = vld [vmem:[#allocation2 + $0x22] sm:$0xff]
      %v688 = vld [vmem:[#allocation2 + $0x32] sm:$0xff]
      %v689 = vld [vmem:[#allocation2 + $0x42] sm:$0xff]
      %v690 = vld [vmem:[#allocation2 + $0x52] sm:$0xff]
      %v691 = vld [vmem:[#allocation2 + $0x62] sm:$0xff]
      %v692 = vld [vmem:[#allocation2 + $0x72] sm:$0xff]
      %v693 = vpack.c.bf16 %v686, %v685
      %v694 = vpack.c.bf16 %v688, %v687
      %v695 = vpack.c.bf16 %v690, %v689
      %v696 = vpack.c.bf16 %v692, %v691
      %s697 = scalar_lea.vmem %s3, 8
      %v698 = vld [vmem:[%s697] sm:$0xf]
      %v700 = vsel %vm538, %v693, 0
      %v703 = vsel %vm538, %v694, 0
      %v706 = vsel %vm538, %v695, 0
      %v709 = vsel %vm538, %v696, 0
      %v712 = vsel %vm608, %v698, 0
      %714 = vmatpush.bf16.msra.mxu0 0
      %715 = vmatpush.bf16.msra.mxu0 0
      %716 = vmatpush.bf16.msra.mxu0 0
      %717 = vmatpush.bf16.msra.mxu0 0
      %718 = vmatpush.bf16.msra.mxu0 0
      %719 = vmatpush.bf16.msra.mxu0 0
      %720 = vmatpush.bf16.msra.mxu0 0
      %721 = vmatpush.bf16.msra.mxu0 %v712
      %722 = vmatmul.bf16.gmra.mxu0 %v700
      %v723 = vpop.f32.mrf.mxu0
      %v724 = vadd.f32 0.0, %v723
      %v725 = vpop.f32.mrf.mxu0
      %v726 = vadd.f32 0.0, %v725
      %727 = vmatmul.bf16.gmra.mxu0 %v703
      %v728 = vpop.f32.mrf.mxu0
      %v729 = vadd.f32 0.0, %v728
      %v730 = vpop.f32.mrf.mxu0
      %v731 = vadd.f32 0.0, %v730
      %732 = vmatmul.bf16.gmra.mxu0 %v706
      %v733 = vpop.f32.mrf.mxu0
      %v734 = vadd.f32 0.0, %v733
      %v735 = vpop.f32.mrf.mxu0
      %v736 = vadd.f32 0.0, %v735
      %737 = vmatmul.bf16.gmra.mxu0 %v709
      %v738 = vpop.f32.mrf.mxu0
      %v739 = vadd.f32 0.0, %v738
      %v740 = vpop.f32.mrf.mxu0
      %v741 = vadd.f32 0.0, %v740
      %742 = vdwg.mxu0
      %v743 = vadd.f32 %v666, %v724
      %v744 = vadd.f32 %v668, %v726
      %v745 = vadd.f32 %v671, %v729
      %v746 = vadd.f32 %v673, %v731
      %v747 = vadd.f32 %v676, %v734
      %v748 = vadd.f32 %v678, %v736
      %v749 = vadd.f32 %v681, %v739
      %v750 = vadd.f32 %v683, %v741
      %v751 = vld [vmem:[%s560] sm:$0xff]
      %v752 = vld [vmem:[%s560 + $0x10] sm:$0xff]
      %v753 = vld [vmem:[%s560 + $0x20] sm:$0xff]
      %v754 = vld [vmem:[%s560 + $0x30] sm:$0xff]
      %v755 = vld [vmem:[%s560 + $0x40] sm:$0xff]
      %v756 = vld [vmem:[%s560 + $0x50] sm:$0xff]
      %v757 = vld [vmem:[%s560 + $0x60] sm:$0xff]
      %v758 = vld [vmem:[%s560 + $0x70] sm:$0xff]
      %v759 = vpack.c.bf16 %v752, %v751
      %v760 = vpack.c.bf16 %v754, %v753
      %v761 = vpack.c.bf16 %v756, %v755
      %v762 = vpack.c.bf16 %v758, %v757
      %s763 = scalar_lea.vmem %s3, 12
      %v764 = vld [vmem:[%s763] sm:$0xf]
      %v766 = vsel %vm538, %v759, 0
      %v769 = vsel %vm538, %v760, 0
      %v772 = vsel %vm538, %v761, 0
      %v775 = vsel %vm538, %v762, 0
      %v778 = vsel %vm608, %v764, 0
      %780 = vmatpush.bf16.msra.mxu0 0
      %781 = vmatpush.bf16.msra.mxu0 0
      %782 = vmatpush.bf16.msra.mxu0 0
      %783 = vmatpush.bf16.msra.mxu0 0
      %784 = vmatpush.bf16.msra.mxu0 0
      %785 = vmatpush.bf16.msra.mxu0 0
      %786 = vmatpush.bf16.msra.mxu0 0
      %787 = vmatpush.bf16.msra.mxu0 %v778
      %788 = vmatmul.bf16.gmra.mxu0 %v766
      %v789 = vpop.f32.mrf.mxu0
      %v790 = vadd.f32 0.0, %v789
      %v791 = vpop.f32.mrf.mxu0
      %v792 = vadd.f32 0.0, %v791
      %793 = vmatmul.bf16.gmra.mxu0 %v769
      %v794 = vpop.f32.mrf.mxu0
      %v795 = vadd.f32 0.0, %v794
      %v796 = vpop.f32.mrf.mxu0
      %v797 = vadd.f32 0.0, %v796
      %798 = vmatmul.bf16.gmra.mxu0 %v772
      %v799 = vpop.f32.mrf.mxu0
      %v800 = vadd.f32 0.0, %v799
      %v801 = vpop.f32.mrf.mxu0
      %v802 = vadd.f32 0.0, %v801
      %803 = vmatmul.bf16.gmra.mxu0 %v775
      %v804 = vpop.f32.mrf.mxu0
      %v805 = vadd.f32 0.0, %v804
      %v806 = vpop.f32.mrf.mxu0
      %v807 = vadd.f32 0.0, %v806
      %808 = vdwg.mxu0
      %v809 = vadd.f32 %v743, %v790
      %v810 = vadd.f32 %v744, %v792
      %v811 = vadd.f32 %v745, %v795
      %v812 = vadd.f32 %v746, %v797
      %v813 = vadd.f32 %v747, %v800
      %v814 = vadd.f32 %v748, %v802
      %v815 = vadd.f32 %v749, %v805
      %v816 = vadd.f32 %v750, %v807
      %v817 = vld [vmem:[%s560 + $0x1] sm:$0xff]
      %v818 = vld [vmem:[%s560 + $0x11] sm:$0xff]
      %v819 = vld [vmem:[%s560 + $0x21] sm:$0xff]
      %v820 = vld [vmem:[%s560 + $0x31] sm:$0xff]
      %v821 = vld [vmem:[%s560 + $0x41] sm:$0xff]
      %v822 = vld [vmem:[%s560 + $0x51] sm:$0xff]
      %v823 = vld [vmem:[%s560 + $0x61] sm:$0xff]
      %v824 = vld [vmem:[%s560 + $0x71] sm:$0xff]
      %v825 = vpack.c.bf16 %v818, %v817
      %v826 = vpack.c.bf16 %v820, %v819
      %v827 = vpack.c.bf16 %v822, %v821
      %v828 = vpack.c.bf16 %v824, %v823
      %s829 = scalar_lea.vmem %s3, 16
      %v830 = vld [vmem:[%s829] sm:$0xf]
      %v832 = vsel %vm538, %v825, 0
      %v835 = vsel %vm538, %v826, 0
      %v838 = vsel %vm538, %v827, 0
      %v841 = vsel %vm538, %v828, 0
      %v844 = vsel %vm608, %v830, 0
      %846 = vmatpush.bf16.msra.mxu0 0
      %847 = vmatpush.bf16.msra.mxu0 0
      %848 = vmatpush.bf16.msra.mxu0 0
      %849 = vmatpush.bf16.msra.mxu0 0
      %850 = vmatpush.bf16.msra.mxu0 0
      %851 = vmatpush.bf16.msra.mxu0 0
      %852 = vmatpush.bf16.msra.mxu0 0
      %853 = vmatpush.bf16.msra.mxu0 %v844
      %854 = vmatmul.bf16.gmra.mxu0 %v832
      %v855 = vpop.f32.mrf.mxu0
      %v856 = vadd.f32 0.0, %v855
      %v857 = vpop.f32.mrf.mxu0
      %v858 = vadd.f32 0.0, %v857
      %859 = vmatmul.bf16.gmra.mxu0 %v835
      %v860 = vpop.f32.mrf.mxu0
      %v861 = vadd.f32 0.0, %v860
      %v862 = vpop.f32.mrf.mxu0
      %v863 = vadd.f32 0.0, %v862
      %864 = vmatmul.bf16.gmra.mxu0 %v838
      %v865 = vpop.f32.mrf.mxu0
      %v866 = vadd.f32 0.0, %v865
      %v867 = vpop.f32.mrf.mxu0
      %v868 = vadd.f32 0.0, %v867
      %869 = vmatmul.bf16.gmra.mxu0 %v841
      %v870 = vpop.f32.mrf.mxu0
      %v871 = vadd.f32 0.0, %v870
      %v872 = vpop.f32.mrf.mxu0
      %v873 = vadd.f32 0.0, %v872
      %874 = vdwg.mxu0
      %v875 = vadd.f32 %v809, %v856
      %v876 = vadd.f32 %v810, %v858
      %v877 = vadd.f32 %v811, %v861
      %v878 = vadd.f32 %v812, %v863
      %v879 = vadd.f32 %v813, %v866
      %v880 = vadd.f32 %v814, %v868
      %v881 = vadd.f32 %v815, %v871
      %v882 = vadd.f32 %v816, %v873
      %v883 = vld [vmem:[%s560 + $0x2] sm:$0xff]
      %v884 = vld [vmem:[%s560 + $0x12] sm:$0xff]
      %v885 = vld [vmem:[%s560 + $0x22] sm:$0xff]
      %v886 = vld [vmem:[%s560 + $0x32] sm:$0xff]
      %v887 = vld [vmem:[%s560 + $0x42] sm:$0xff]
      %v888 = vld [vmem:[%s560 + $0x52] sm:$0xff]
      %v889 = vld [vmem:[%s560 + $0x62] sm:$0xff]
      %v890 = vld [vmem:[%s560 + $0x72] sm:$0xff]
      %v891 = vpack.c.bf16 %v884, %v883
      %v892 = vpack.c.bf16 %v886, %v885
      %v893 = vpack.c.bf16 %v888, %v887
      %v894 = vpack.c.bf16 %v890, %v889
      %s895 = scalar_lea.vmem %s3, 20
      %v896 = vld [vmem:[%s895] sm:$0xf]
      %v898 = vsel %vm538, %v891, 0
      %v901 = vsel %vm538, %v892, 0
      %v904 = vsel %vm538, %v893, 0
      %v907 = vsel %vm538, %v894, 0
      %v910 = vsel %vm608, %v896, 0
      %912 = vmatpush.bf16.msra.mxu0 0
      %913 = vmatpush.bf16.msra.mxu0 0
      %914 = vmatpush.bf16.msra.mxu0 0
      %915 = vmatpush.bf16.msra.mxu0 0
      %916 = vmatpush.bf16.msra.mxu0 0
      %917 = vmatpush.bf16.msra.mxu0 0
      %918 = vmatpush.bf16.msra.mxu0 0
      %919 = vmatpush.bf16.msra.mxu0 %v910
      %920 = vmatmul.bf16.gmra.mxu0 %v898
      %v921 = vpop.f32.mrf.mxu0
      %v922 = vadd.f32 0.0, %v921
      %v923 = vpop.f32.mrf.mxu0
      %v924 = vadd.f32 0.0, %v923
      %925 = vmatmul.bf16.gmra.mxu0 %v901
      %v926 = vpop.f32.mrf.mxu0
      %v927 = vadd.f32 0.0, %v926
      %v928 = vpop.f32.mrf.mxu0
      %v929 = vadd.f32 0.0, %v928
      %930 = vmatmul.bf16.gmra.mxu0 %v904
      %v931 = vpop.f32.mrf.mxu0
      %v932 = vadd.f32 0.0, %v931
      %v933 = vpop.f32.mrf.mxu0
      %v934 = vadd.f32 0.0, %v933
      %935 = vmatmul.bf16.gmra.mxu0 %v907
      %v936 = vpop.f32.mrf.mxu0
      %v937 = vadd.f32 0.0, %v936
      %v938 = vpop.f32.mrf.mxu0
      %v939 = vadd.f32 0.0, %v938
      %940 = vdwg.mxu0
      %v941 = vadd.f32 %v875, %v922
      %v942 = vadd.f32 %v876, %v924
      %v943 = vadd.f32 %v877, %v927
      %v944 = vadd.f32 %v878, %v929
      %v945 = vadd.f32 %v879, %v932
      %v946 = vadd.f32 %v880, %v934
      %v947 = vadd.f32 %v881, %v937
      %v948 = vadd.f32 %v882, %v939
      %s949 = scalar_lea.vmem [#allocation2], 32
      %v950 = vld [vmem:[%s949] sm:$0xff]
      %v951 = vld [vmem:[%s949 + $0x10] sm:$0xff]
      %v952 = vld [vmem:[%s949 + $0x20] sm:$0xff]
      %v953 = vld [vmem:[%s949 + $0x30] sm:$0xff]
      %v954 = vld [vmem:[%s949 + $0x40] sm:$0xff]
      %v955 = vld [vmem:[%s949 + $0x50] sm:$0xff]
      %v956 = vld [vmem:[%s949 + $0x60] sm:$0xff]
      %v957 = vld [vmem:[%s949 + $0x70] sm:$0xff]
      %v958 = vpack.c.bf16 %v951, %v950
      %v959 = vpack.c.bf16 %v953, %v952
      %v960 = vpack.c.bf16 %v955, %v954
      %v961 = vpack.c.bf16 %v957, %v956
      %s962 = scalar_lea.vmem %s3, 24
      %v963 = vld [vmem:[%s962] sm:$0xf]
      %v965 = vsel %vm538, %v958, 0
      %v968 = vsel %vm538, %v959, 0
      %v971 = vsel %vm538, %v960, 0
      %v974 = vsel %vm538, %v961, 0
      %v977 = vsel %vm608, %v963, 0
      %979 = vmatpush.bf16.msra.mxu0 0
      %980 = vmatpush.bf16.msra.mxu0 0
      %981 = vmatpush.bf16.msra.mxu0 0
      %982 = vmatpush.bf16.msra.mxu0 0
      %983 = vmatpush.bf16.msra.mxu0 0
      %984 = vmatpush.bf16.msra.mxu0 0
      %985 = vmatpush.bf16.msra.mxu0 0
      %986 = vmatpush.bf16.msra.mxu0 %v977
      %987 = vmatmul.bf16.gmra.mxu0 %v965
      %v988 = vpop.f32.mrf.mxu0
      %v989 = vadd.f32 0.0, %v988
      %v990 = vpop.f32.mrf.mxu0
      %v991 = vadd.f32 0.0, %v990
      %992 = vmatmul.bf16.gmra.mxu0 %v968
      %v993 = vpop.f32.mrf.mxu0
      %v994 = vadd.f32 0.0, %v993
      %v995 = vpop.f32.mrf.mxu0
      %v996 = vadd.f32 0.0, %v995
      %997 = vmatmul.bf16.gmra.mxu0 %v971
      %v998 = vpop.f32.mrf.mxu0
      %v999 = vadd.f32 0.0, %v998
      %v1000 = vpop.f32.mrf.mxu0
      %v1001 = vadd.f32 0.0, %v1000
      %1002 = vmatmul.bf16.gmra.mxu0 %v974
      %v1003 = vpop.f32.mrf.mxu0
      %v1004 = vadd.f32 0.0, %v1003
      %v1005 = vpop.f32.mrf.mxu0
      %v1006 = vadd.f32 0.0, %v1005
      %1007 = vdwg.mxu0
      %v1008 = vadd.f32 %v941, %v989
      %v1009 = vadd.f32 %v942, %v991
      %v1010 = vadd.f32 %v943, %v994
      %v1011 = vadd.f32 %v944, %v996
      %v1012 = vadd.f32 %v945, %v999
      %v1013 = vadd.f32 %v946, %v1001
      %v1014 = vadd.f32 %v947, %v1004
      %v1015 = vadd.f32 %v948, %v1006
      %v1016 = vld [vmem:[%s949 + $0x1] sm:$0xff]
      %v1017 = vld [vmem:[%s949 + $0x11] sm:$0xff]
      %v1018 = vld [vmem:[%s949 + $0x21] sm:$0xff]
      %v1019 = vld [vmem:[%s949 + $0x31] sm:$0xff]
      %v1020 = vld [vmem:[%s949 + $0x41] sm:$0xff]
      %v1021 = vld [vmem:[%s949 + $0x51] sm:$0xff]
      %v1022 = vld [vmem:[%s949 + $0x61] sm:$0xff]
      %v1023 = vld [vmem:[%s949 + $0x71] sm:$0xff]
      %v1024 = vpack.c.bf16 %v1017, %v1016
      %v1025 = vpack.c.bf16 %v1019, %v1018
      %v1026 = vpack.c.bf16 %v1021, %v1020
      %v1027 = vpack.c.bf16 %v1023, %v1022
      %s1028 = scalar_lea.vmem %s3, 28
      %v1029 = vld [vmem:[%s1028] sm:$0xf]
      %v1031 = vsel %vm538, %v1024, 0
      %v1034 = vsel %vm538, %v1025, 0
      %v1037 = vsel %vm538, %v1026, 0
      %v1040 = vsel %vm538, %v1027, 0
      %v1043 = vsel %vm608, %v1029, 0
      %1045 = vmatpush.bf16.msra.mxu0 0
      %1046 = vmatpush.bf16.msra.mxu0 0
      %1047 = vmatpush.bf16.msra.mxu0 0
      %1048 = vmatpush.bf16.msra.mxu0 0
      %1049 = vmatpush.bf16.msra.mxu0 0
      %1050 = vmatpush.bf16.msra.mxu0 0
      %1051 = vmatpush.bf16.msra.mxu0 0
      %1052 = vmatpush.bf16.msra.mxu0 %v1043
      %1053 = vmatmul.bf16.gmra.mxu0 %v1031
      %v1054 = vpop.f32.mrf.mxu0
      %v1055 = vadd.f32 0.0, %v1054
      %v1056 = vpop.f32.mrf.mxu0
      %v1057 = vadd.f32 0.0, %v1056
      %1058 = vmatmul.bf16.gmra.mxu0 %v1034
      %v1059 = vpop.f32.mrf.mxu0
      %v1060 = vadd.f32 0.0, %v1059
      %v1061 = vpop.f32.mrf.mxu0
      %v1062 = vadd.f32 0.0, %v1061
      %1063 = vmatmul.bf16.gmra.mxu0 %v1037
      %v1064 = vpop.f32.mrf.mxu0
      %v1065 = vadd.f32 0.0, %v1064
      %v1066 = vpop.f32.mrf.mxu0
      %v1067 = vadd.f32 0.0, %v1066
      %1068 = vmatmul.bf16.gmra.mxu0 %v1040
      %v1069 = vpop.f32.mrf.mxu0
      %v1070 = vadd.f32 0.0, %v1069
      %v1071 = vpop.f32.mrf.mxu0
      %v1072 = vadd.f32 0.0, %v1071
      %1073 = vdwg.mxu0
      %v1074 = vadd.f32 %v1008, %v1055
      %v1075 = vadd.f32 %v1009, %v1057
      %v1076 = vadd.f32 %v1010, %v1060
      %v1077 = vadd.f32 %v1011, %v1062
      %v1078 = vadd.f32 %v1012, %v1065
      %v1079 = vadd.f32 %v1013, %v1067
      %v1080 = vadd.f32 %v1014, %v1070
      %v1081 = vadd.f32 %v1015, %v1072
      %v1082 = vld [vmem:[%s949 + $0x2] sm:$0xff]
      %v1083 = vld [vmem:[%s949 + $0x12] sm:$0xff]
      %v1084 = vld [vmem:[%s949 + $0x22] sm:$0xff]
      %v1085 = vld [vmem:[%s949 + $0x32] sm:$0xff]
      %v1086 = vld [vmem:[%s949 + $0x42] sm:$0xff]
      %v1087 = vld [vmem:[%s949 + $0x52] sm:$0xff]
      %v1088 = vld [vmem:[%s949 + $0x62] sm:$0xff]
      %v1089 = vld [vmem:[%s949 + $0x72] sm:$0xff]
      %v1090 = vpack.c.bf16 %v1083, %v1082
      %v1091 = vpack.c.bf16 %v1085, %v1084
      %v1092 = vpack.c.bf16 %v1087, %v1086
      %v1093 = vpack.c.bf16 %v1089, %v1088
      %s1094 = scalar_lea.vmem %s3, 32
      %v1095 = vld [vmem:[%s1094] sm:$0xf]
      %v1097 = vsel %vm538, %v1090, 0
      %v1100 = vsel %vm538, %v1091, 0
      %v1103 = vsel %vm538, %v1092, 0
      %v1106 = vsel %vm538, %v1093, 0
      %v1109 = vsel %vm608, %v1095, 0
      %1111 = vmatpush.bf16.msra.mxu0 0
      %1112 = vmatpush.bf16.msra.mxu0 0
      %1113 = vmatpush.bf16.msra.mxu0 0
      %1114 = vmatpush.bf16.msra.mxu0 0
      %1115 = vmatpush.bf16.msra.mxu0 0
      %1116 = vmatpush.bf16.msra.mxu0 0
      %1117 = vmatpush.bf16.msra.mxu0 0
      %1118 = vmatpush.bf16.msra.mxu0 %v1109
      %1119 = vmatmul.bf16.gmra.mxu0 %v1097
      %v1120 = vpop.f32.mrf.mxu0
      %v1121 = vadd.f32 0.0, %v1120
      %v1122 = vpop.f32.mrf.mxu0
      %v1123 = vadd.f32 0.0, %v1122
      %1124 = vmatmul.bf16.gmra.mxu0 %v1100
      %v1125 = vpop.f32.mrf.mxu0
      %v1126 = vadd.f32 0.0, %v1125
      %v1127 = vpop.f32.mrf.mxu0
      %v1128 = vadd.f32 0.0, %v1127
      %1129 = vmatmul.bf16.gmra.mxu0 %v1103
      %v1130 = vpop.f32.mrf.mxu0
      %v1131 = vadd.f32 0.0, %v1130
      %v1132 = vpop.f32.mrf.mxu0
      %v1133 = vadd.f32 0.0, %v1132
      %1134 = vmatmul.bf16.gmra.mxu0 %v1106
      %v1135 = vpop.f32.mrf.mxu0
      %v1136 = vadd.f32 0.0, %v1135
      %v1137 = vpop.f32.mrf.mxu0
      %v1138 = vadd.f32 0.0, %v1137
      %1139 = vdwg.mxu0
      %v1140 = vadd.f32 %v1074, %v1121
      %v1141 = vadd.f32 %v1075, %v1123
      %v1142 = vadd.f32 %v1076, %v1126
      %v1143 = vadd.f32 %v1077, %v1128
      %v1144 = vadd.f32 %v1078, %v1131
      %v1145 = vadd.f32 %v1079, %v1133
      %v1146 = vadd.f32 %v1080, %v1136
      %v1147 = vadd.f32 %v1081, %v1138
      %v1148 = vld [vmem:[%s246] sm:$0xff]
      %v1149 = vld [vmem:[%s246 + $0x10] sm:$0xff]
      %v1150 = vld [vmem:[%s246 + $0x20] sm:$0xff]
      %v1151 = vld [vmem:[%s246 + $0x30] sm:$0xff]
      %v1152 = vld [vmem:[%s246 + $0x40] sm:$0xff]
      %v1153 = vld [vmem:[%s246 + $0x50] sm:$0xff]
      %v1154 = vld [vmem:[%s246 + $0x60] sm:$0xff]
      %v1155 = vld [vmem:[%s246 + $0x70] sm:$0xff]
      %v1156 = vpack.c.bf16 %v1149, %v1148
      %v1157 = vpack.c.bf16 %v1151, %v1150
      %v1158 = vpack.c.bf16 %v1153, %v1152
      %v1159 = vpack.c.bf16 %v1155, %v1154
      %v1160 = vld [vmem:[%s4] sm:$0xf]
      %v1161 = vld [vmem:[%s4 + $0x4] sm:$0xf]
      %v1164 = vunpack.c.l.b16 %v1160
      %v1165 = vunpack.c.l.b16 %v1161
      %v1166 = vpack.c.b16 %v1165, %v1164
      %v1169 = vsel %vm288, %v1156, 0
      %v1172 = vsel %vm288, %v1157, 0
      %v1175 = vsel %vm288, %v1158, 0
      %v1178 = vsel %vm288, %v1159, 0
      %1180 = vmatpush.bf16.msra.mxu0 0
      %1181 = vmatpush.bf16.msra.mxu0 0
      %1182 = vmatpush.bf16.msra.mxu0 0
      %1183 = vmatpush.bf16.msra.mxu0 0
      %1184 = vmatpush.bf16.msra.mxu0 0
      %1185 = vmatpush.bf16.msra.mxu0 0
      %1186 = vmatpush.bf16.msra.mxu0 0
      %1187 = vmatpush.bf16.msra.mxu0 %v1166
      %1188 = vmatmul.bf16.gmra.mxu0 %v1169
      %v1189 = vpop.f32.mrf.mxu0
      %v1190 = vadd.f32 0.0, %v1189
      %v1191 = vpop.f32.mrf.mxu0
      %v1192 = vadd.f32 0.0, %v1191
      %1193 = vmatmul.bf16.gmra.mxu0 %v1172
      %v1194 = vpop.f32.mrf.mxu0
      %v1195 = vadd.f32 0.0, %v1194
      %v1196 = vpop.f32.mrf.mxu0
      %v1197 = vadd.f32 0.0, %v1196
      %1198 = vmatmul.bf16.gmra.mxu0 %v1175
      %v1199 = vpop.f32.mrf.mxu0
      %v1200 = vadd.f32 0.0, %v1199
      %v1201 = vpop.f32.mrf.mxu0
      %v1202 = vadd.f32 0.0, %v1201
      %1203 = vmatmul.bf16.gmra.mxu0 %v1178
      %v1204 = vpop.f32.mrf.mxu0
      %v1205 = vadd.f32 0.0, %v1204
      %v1206 = vpop.f32.mrf.mxu0
      %v1207 = vadd.f32 0.0, %v1206
      %1208 = vdwg.mxu0
      %v1209 = vadd.f32 %v1140, %v1190
      %v1210 = vadd.f32 %v1141, %v1192
      %v1211 = vadd.f32 %v1142, %v1195
      %v1212 = vadd.f32 %v1143, %v1197
      %v1213 = vadd.f32 %v1144, %v1200
      %v1214 = vadd.f32 %v1145, %v1202
      %v1215 = vadd.f32 %v1146, %v1205
      %v1216 = vadd.f32 %v1147, %v1207
      %v1217 = vld [vmem:[%s5] sm:$0x1]
      %v1219 = vperm.slane %v1217, 0
      %v1221 = vadd.f32 %v1209, %v1219
      %v1222 = vadd.f32 %v1210, %v1219
      %v1223 = vadd.f32 %v1211, %v1219
      %v1224 = vadd.f32 %v1212, %v1219
      %v1225 = vadd.f32 %v1213, %v1219
      %v1226 = vadd.f32 %v1214, %v1219
      %v1227 = vadd.f32 %v1215, %v1219
      %v1228 = vadd.f32 %v1216, %v1219
      %v1229 = vmax.f32 %v1221, 0.0
      %v1230 = vmax.f32 %v1222, 0.0
      %v1231 = vmax.f32 %v1223, 0.0
      %v1232 = vmax.f32 %v1224, 0.0
      %v1233 = vmax.f32 %v1225, 0.0
      %v1234 = vmax.f32 %v1226, 0.0
      %v1235 = vmax.f32 %v1227, 0.0
      %v1236 = vmax.f32 %v1228, 0.0
      %1237 = vst [vmem:[%s251] sm:$0xff] %v1229
      %1238 = vst [vmem:[%s251 + $0x8] sm:$0xff] %v1230
      %1239 = vst [vmem:[%s251 + $0x10] sm:$0xff] %v1231
      %1240 = vst [vmem:[%s251 + $0x18] sm:$0xff] %v1232
      %1241 = vst [vmem:[%s251 + $0x20] sm:$0xff] %v1233
      %1242 = vst [vmem:[%s251 + $0x28] sm:$0xff] %v1234
      %1243 = vst [vmem:[%s251 + $0x30] sm:$0xff] %v1235
      %1244 = vst [vmem:[%s251 + $0x38] sm:$0xff] %v1236
      %p1245 = scmp.lt.s32.totalorder %s17, 1
      %s1246 = scalar_select %p1245, %s17, 1
      %s1247 = smul.addr %s1246, 8
      %s1248 = smul.addr %s1247, 8
      %s1249 = scalar_lea.vmem %s6, %s1248
      // Predicated region
      $region45: #{resblock_forward.1} parent=43 // pred_check
        %p1250 = pneg %p166
      $region46: #{resblock_forward.1} parent=43 // pred_check_branch
        %1252 = sbr.rel (%p1250) target = $region48
      $region47: #{resblock_forward.1} parent=43 // pred_region
        _
      $region48: #{resblock_forward.1} parent=43 // pred_fallthru
        _
    $region44: #{resblock_forward.1} parent=5 // pred_fallthru
      _
    %p1253 = scmp.le.s32.totalorder 2, %s12
    // Predicated region
    $region49: #{resblock_forward.1} parent=5 // pred_check
      %p1254 = pneg %p1253
    $region50: #{resblock_forward.1} parent=5 // pred_check_branch
      %1256 = sbr.rel (%p1254) target = $region52
    $region51: #{resblock_forward.1} parent=5 // pred_region
      %s1257 = ssub.s32 %s12, 2
      // Predicated region
      $region53: #{resblock_forward.1} parent=51 // pred_check
        %p1258 = pneg %p172
      $region54: #{resblock_forward.1} parent=51 // pred_check_branch
        %1260 = sbr.rel (%p1258) target = $region56
      $region55: #{resblock_forward.1} parent=51 // pred_region
        %p1261 = scmp.lt.s32.totalorder %s18, 1
        %s1262 = scalar_select %p1261, %s18, 1
        %s1263 = smul.addr %s1262, 8
        %s1264 = smul.addr %s1263, 8
        %s1265 = scalar_lea.vmem %s6, %s1264
      $region56: #{resblock_forward.1} parent=51 // pred_fallthru
        _
    $region52: #{resblock_forward.1} parent=5 // pred_fallthru
      _
  $region6: #{resblock_forward.1} parent=0 // loop_footer
    %s16 = sadd.s32 1, %s12
  $region7: #{resblock_forward.1} parent=0 // loop_footer_branch
    %11 = sbr.rel target = $region3
  $region8: #{resblock_forward.1} parent=0 // loop_exit
    _

</llo_original>
